<compile_context>
chip_gen: v7x
topology: tpu7x:2x2x1
jax: 0.10.0
libtpu: 0.0.40
codegen_flags: <defaults>
</compile_context>

<pallas_src>
import functools

import jax
import jax.numpy as jnp
from jax.experimental import pallas as pl
from jax.experimental.pallas import tpu as pltpu


def _cdiv(a: int, b: int) -> int:
    return -(-a // b)


def _round_up(a: int, b: int) -> int:
    return _cdiv(a, b) * b


def _permut_inv_gp_kernel(b_row_ref, b_col_ref, x_ref, max_ref, sum_ref,
                          max_acc, sum_acc, *, gt):
    """One (split, graph-tile, feature-tile) output block, reducing over node tiles."""
    n = pl.program_id(3)

    @pl.when(n == 0)
    def _init():
        max_acc[...] = jnp.full(max_acc.shape, -jnp.inf, max_acc.dtype)
        sum_acc[...] = jnp.zeros(sum_acc.shape, sum_acc.dtype)

    g_base = pl.program_id(1) * gt
    tn = x_ref.shape[0]

    xf = x_ref[...].astype(jnp.float32)            # [tn, tf]
    b_row = b_row_ref[...]                         # [1, tn]  int32 (-1 = padding)
    b_col = b_col_ref[...]                         # [tn, 1]  int32 (-1 = padding)

    # ---- sum pool: one-hot [Gt, tn] @ [tn, tf] on the MXU (f32 accumulate) ----
    gid = g_base + jax.lax.broadcasted_iota(jnp.int32, (gt, tn), 0)
    onehot = (gid == b_row).astype(jnp.float32)
    sum_acc[...] += jnp.dot(onehot, xf, preferred_element_type=jnp.float32)

    # ---- max pool: per-graph masked sublane reduce, no [Gt, tn, tf] temp ----
    rows = []
    for g in range(gt):                            # gt is small & static -> unrolled
        masked = jnp.where(b_col == (g_base + g), xf, -jnp.inf)   # [tn, tf]
        rows.append(jnp.max(masked, axis=0, keepdims=True))       # [1, tf]
    max_acc[...] = jnp.maximum(max_acc[...], jnp.concatenate(rows, axis=0))

    @pl.when(n == pl.num_programs(3) - 1)
    def _finalize():
        max_ref[...] = max_acc[...][None].astype(max_ref.dtype)
        sum_ref[...] = sum_acc[...][None].astype(sum_ref.dtype)


@functools.partial(jax.jit, static_argnames=("num_graphs", "tn", "tf", "gt"))
def permut_inv_gp(x, batch, num_graphs, *, tn=None, tf=None, gt=None):
    """concat([global_max_pool(x, batch), global_add_pool(x, batch)], dim=1).

    Nodes with batch id outside [0, num_graphs) are dropped (same as
    jax.ops.segment_*); padded rows use id -1 on purpose.
    """
    N, F = x.shape
    G = int(num_graphs)
    itemsize = x.dtype.itemsize
    sub = {4: 8, 2: 16, 1: 32}[itemsize]           # sublane multiple for x's dtype

    # ---- feature tile: lane-dense, prefer >= 256 when F allows ----
    if tf is None:
        if F % 128 == 0:
            tf = 512 if F % 512 == 0 else (256 if F % 256 == 0 else 128)
            tf = min(tf, F)
        else:
            tf = F                                  # small / unaligned F: full dim
    # ---- graph tile: multiple of 8, capped so the unrolled max loop stays small
    if gt is None:
        gt = _round_up(min(G, 16), 8)
    # ---- node tile: single step for small N, else large tile (step overhead) ----
    if tn is None:
        tn = _round_up(N, sub) if N <= 1024 else 1024

    # ---- hard VMEM budget (v7x has only 64 MiB physical VMEM) ----
    def vmem_est(tn_, tf_):
        return (2 * tn_ * tf_ * itemsize            # double-buffered x tile
                + 2 * 2 * tn_ * 4                   # batch ids (row + column)
                + 2 * 2 * gt * tf_ * 4              # two output blocks, double-buffered
                + 2 * gt * tf_ * 4                  # accumulator scratch
                + 3 * tn_ * tf_ * 4)                # in-kernel temporaries headroom

    budget = 28 << 20
    while vmem_est(tn, tf) > budget and tn % 256 == 0:   # shrink tn first:
        tn //= 2                                         # keeps output stores lane-dense
    while vmem_est(tn, tf) > budget and tf % 256 == 0:
        tf //= 2
    assert vmem_est(tn, tf) <= budget, "PermutInvGP tile selection exceeds VMEM budget"
    assert F % tf == 0 and (tf % 128 == 0 or tf == F)

    node_steps = _cdiv(N, tn)
    f_tiles = F // tf
    g_tiles = _cdiv(G, gt)
    # v7x: if the parallel (graph, feature) axes have a single block, split the node
    # range 2 ways so the second TensorCore gets work (harmless on v5e/v6e).
    n_split = 2 if (f_tiles * g_tiles == 1 and node_steps >= 2) else 1
    steps = _cdiv(node_steps, n_split)
    n_pad = n_split * steps * tn
    g_pad = g_tiles * gt
    assert tn % 128 == 0 or tn == n_pad             # lane constraint for the id row

    # ---- pad node axis; padded rows get batch id -1 (matches no graph) ----
    batch = batch.astype(jnp.int32)
    pad = n_pad - N
    if pad:
        x = jnp.pad(x, ((0, pad), (0, 0)))
        batch = jnp.pad(batch, (0, pad), constant_values=-1)
    b_row = batch.reshape(1, n_pad)                 # lane-major ids (MXU one-hot lhs)
    b_col = batch.reshape(n_pad, 1)                 # sublane-major ids (max-path masks)

    kernel = functools.partial(_permut_inv_gp_kernel, gt=gt)

    max_parts, sum_parts = pl.pallas_call(
        kernel,
        out_shape=(
            jax.ShapeDtypeStruct((n_split, g_pad, F), x.dtype),
            jax.ShapeDtypeStruct((n_split, g_pad, F), x.dtype),
        ),
        grid_spec=pltpu.PrefetchScalarGridSpec(
            num_scalar_prefetch=0,
            grid=(n_split, g_tiles, f_tiles, steps),   # node reduction axis last
            in_specs=[
                pl.BlockSpec((1, tn), lambda s, g, f, n: (0, s * steps + n)),
                pl.BlockSpec((tn, 1), lambda s, g, f, n: (s * steps + n, 0)),
                pl.BlockSpec((tn, tf), lambda s, g, f, n: (s * steps + n, f)),
            ],
            out_specs=[
                pl.BlockSpec((1, gt, tf), lambda s, g, f, n: (s, g, f)),  # max half
                pl.BlockSpec((1, gt, tf), lambda s, g, f, n: (s, g, f)),  # sum half
            ],
            scratch_shapes=[
                pltpu.VMEM((gt, tf), jnp.float32),     # max accumulator
                pltpu.VMEM((gt, tf), jnp.float32),     # sum accumulator
            ],
        ),
        compiler_params=pltpu.CompilerParams(
            dimension_semantics=("parallel", "parallel", "parallel", "arbitrary"),
            vmem_limit_bytes=48 * 1024 * 1024,
        ),
    )(b_row, b_col, x)

    max_out = jnp.max(max_parts, axis=0)[:G]
    sum_out = jnp.sum(sum_parts, axis=0)[:G]
    return jnp.concatenate([max_out, sum_out], axis=1)


if __name__ == "__main__":
    key = jax.random.PRNGKey(0)

    # Small graph batch: 6 graphs with uneven sizes, 300 nodes, 128 features.
    G = 6
    sizes = (50, 70, 30, 60, 45, 45)
    F = 128
    N = sum(sizes)

    x = jax.random.normal(key, (N, F), jnp.float32)
    batch = jnp.concatenate(
        [jnp.full((s,), g, dtype=jnp.int32) for g, s in enumerate(sizes)]
    )

    y = permut_inv_gp(x, batch, G)
    y = jax.block_until_ready(y)

    # Reference in plain JAX (same math as torch_geometric's global_max/add_pool).
    ref = jnp.concatenate(
        [
            jax.ops.segment_max(x, batch, num_segments=G),
            jax.ops.segment_sum(x, batch, num_segments=G),
        ],
        axis=1,
    )

    assert y.shape == (G, 2 * F)
    assert jnp.allclose(y, ref, atol=1e-4, rtol=1e-5)

    print("KERNEL_OK")
</pallas_src>

<mosaic_0001>
module attributes {stable_mosaic.version = 11 : i64} {
  func.func @_permut_inv_gp_kernel(%arg0: i32, %arg1: i32, %arg2: i32, %arg3: i32, %arg4: memref<1x304xi32, #tpu.memory_space<vmem>>, %arg5: memref<304x1xi32, #tpu.memory_space<vmem>>, %arg6: memref<304x128xf32, #tpu.memory_space<vmem>>, %arg7: memref<1x8x128xf32, #tpu.memory_space<vmem>>, %arg8: memref<1x8x128xf32, #tpu.memory_space<vmem>>, %arg9: memref<8x128xf32, #tpu.memory_space<vmem>>, %arg10: memref<8x128xf32, #tpu.memory_space<vmem>>) attributes {dimension_semantics = [#tpu.dimension_semantics<parallel>, #tpu.dimension_semantics<parallel>, #tpu.dimension_semantics<parallel>, #tpu.dimension_semantics<arbitrary>], iteration_bounds = array<i64: 1, 1, 1, 1>, scalar_prefetch = 0 : i64, scratch_operands = 2 : i64, tpu.core_type = #tpu.core_type<tc>, window_params = [{transform_indices = @transform_0, window_bounds = array<i64: 1, 304>}, {transform_indices = @transform_1, window_bounds = array<i64: 304, 1>}, {transform_indices = @transform_2, window_bounds = array<i64: 304, 128>}, {transform_indices = @transform_3, window_bounds = array<i64: 1, 8, 128>}, {transform_indices = @transform_4, window_bounds = array<i64: 1, 8, 128>}]} {
    %c0_i32 = arith.constant 0 : i32
    %0 = arith.cmpi eq, %arg3, %c0_i32 : i32
    %1 = arith.extui %0 : i1 to i32
    %c0_i32_0 = arith.constant 0 : i32
    %2 = arith.cmpi ne, %1, %c0_i32_0 : i32
    scf.if %2 {
      %cst_33 = arith.constant 0xFF800000 : f32
      %97 = vector.broadcast %cst_33 : f32 to vector<8x128xf32>
      %c0_34 = arith.constant 0 : index
      %c0_35 = arith.constant 0 : index
      %98 = vector.load %arg9[%c0_34, %c0_35] : memref<8x128xf32, #tpu.memory_space<vmem>>, vector<8x128xf32>
      tpu.vector_store %arg9[%c0_34, %c0_35], %97 {strides = array<i32>} : memref<8x128xf32, #tpu.memory_space<vmem>>, vector<8x128xf32>,
      %cst_36 = arith.constant 0.000000e+00 : f32
      %99 = vector.broadcast %cst_36 : f32 to vector<8x128xf32>
      %c0_37 = arith.constant 0 : index
      %c0_38 = arith.constant 0 : index
      %100 = vector.load %arg10[%c0_37, %c0_38] : memref<8x128xf32, #tpu.memory_space<vmem>>, vector<8x128xf32>
      tpu.vector_store %arg10[%c0_37, %c0_38], %99 {strides = array<i32>} : memref<8x128xf32, #tpu.memory_space<vmem>>, vector<8x128xf32>,
    } else {
    }
    %c8_i32 = arith.constant 8 : i32
    %3 = arith.muli %arg1, %c8_i32 : i32
    %c0 = arith.constant 0 : index
    %c0_1 = arith.constant 0 : index
    %4 = vector.load %arg6[%c0, %c0_1] : memref<304x128xf32, #tpu.memory_space<vmem>>, vector<304x128xf32>
    %c0_2 = arith.constant 0 : index
    %c0_3 = arith.constant 0 : index
    %5 = vector.load %arg4[%c0_2, %c0_3] : memref<1x304xi32, #tpu.memory_space<vmem>>, vector<1x304xi32>
    %c0_4 = arith.constant 0 : index
    %c0_5 = arith.constant 0 : index
    %6 = vector.load %arg5[%c0_4, %c0_5] : memref<304x1xi32, #tpu.memory_space<vmem>>, vector<304x1xi32>
    %7 = tpu.iota {dimensions = array<i32: 0>} : vector<8x304xi32>
    %8 = vector.broadcast %3 : i32 to vector<8x304xi32>
    %9 = arith.addi %8, %7 : vector<8x304xi32>
    %10 = vector.broadcast %5 : vector<1x304xi32> to vector<8x304xi32>
    %11 = arith.cmpi eq, %9, %10 : vector<8x304xi32>
    %12 = arith.extui %11 : vector<8x304xi1> to vector<8x304xi32>
    %13 = arith.sitofp %12 : vector<8x304xi32> to vector<8x304xf32>
    %c0_6 = arith.constant 0 : index
    %c0_7 = arith.constant 0 : index
    %14 = vector.load %arg10[%c0_6, %c0_7] : memref<8x128xf32, #tpu.memory_space<vmem>>, vector<8x128xf32>
    %cst = arith.constant dense<0.000000e+00> : vector<8x128xf32>
    %15 = tpu.matmul %13, %4, %cst {dimension_numbers = #tpu.dot_dimension_numbers<[1], [0], [0], [1], [0, 0, 1, 1], [], []>} : vector<8x304xf32>, vector<304x128xf32>, vector<8x128xf32> -> vector<8x128xf32>
    %16 = arith.addf %14, %15 : vector<8x128xf32>
    %c0_8 = arith.constant 0 : index
    %c0_9 = arith.constant 0 : index
    %17 = vector.load %arg10[%c0_8, %c0_9] : memref<8x128xf32, #tpu.memory_space<vmem>>, vector<8x128xf32>
    tpu.vector_store %arg10[%c0_8, %c0_9], %16 {strides = array<i32>} : memref<8x128xf32, #tpu.memory_space<vmem>>, vector<8x128xf32>,
    %c0_i32_10 = arith.constant 0 : i32
    %18 = arith.addi %3, %c0_i32_10 : i32
    %19 = vector.broadcast %18 : i32 to vector<304x1xi32>
    %20 = arith.cmpi eq, %6, %19 : vector<304x1xi32>
    %cst_11 = arith.constant 0xFF800000 : f32
    %21 = vector.shape_cast %20 : vector<304x1xi1> to vector<304x1xi1>
    %22 = vector.broadcast %21 : vector<304x1xi1> to vector<304x128xi1>
    %23 = vector.broadcast %cst_11 : f32 to vector<304x128xf32>
    %24 = arith.select %22, %4, %23 : vector<304x128xi1>, vector<304x128xf32>
    %cst_12 = arith.constant dense<0xFF800000> : vector<128xf32>
    %25 = vector.multi_reduction <maximumf>, %24, %cst_12 [0] : vector<304x128xf32> to vector<128xf32>
    %26 = vector.shape_cast %25 : vector<128xf32> to vector<1x128xf32>
    %c1_i32 = arith.constant 1 : i32
    %27 = arith.addi %3, %c1_i32 : i32
    %28 = vector.broadcast %27 : i32 to vector<304x1xi32>
    %29 = arith.cmpi eq, %6, %28 : vector<304x1xi32>
    %cst_13 = arith.constant 0xFF800000 : f32
    %30 = vector.shape_cast %29 : vector<304x1xi1> to vector<304x1xi1>
    %31 = vector.broadcast %30 : vector<304x1xi1> to vector<304x128xi1>
    %32 = vector.broadcast %cst_13 : f32 to vector<304x128xf32>
    %33 = arith.select %31, %4, %32 : vector<304x128xi1>, vector<304x128xf32>
    %cst_14 = arith.constant dense<0xFF800000> : vector<128xf32>
    %34 = vector.multi_reduction <maximumf>, %33, %cst_14 [0] : vector<304x128xf32> to vector<128xf32>
    %35 = vector.shape_cast %34 : vector<128xf32> to vector<1x128xf32>
    %c2_i32 = arith.constant 2 : i32
    %36 = arith.addi %3, %c2_i32 : i32
    %37 = vector.broadcast %36 : i32 to vector<304x1xi32>
    %38 = arith.cmpi eq, %6, %37 : vector<304x1xi32>
    %cst_15 = arith.constant 0xFF800000 : f32
    %39 = vector.shape_cast %38 : vector<304x1xi1> to vector<304x1xi1>
    %40 = vector.broadcast %39 : vector<304x1xi1> to vector<304x128xi1>
    %41 = vector.broadcast %cst_15 : f32 to vector<304x128xf32>
    %42 = arith.select %40, %4, %41 : vector<304x128xi1>, vector<304x128xf32>
    %cst_16 = arith.constant dense<0xFF800000> : vector<128xf32>
    %43 = vector.multi_reduction <maximumf>, %42, %cst_16 [0] : vector<304x128xf32> to vector<128xf32>
    %44 = vector.shape_cast %43 : vector<128xf32> to vector<1x128xf32>
    %c3_i32 = arith.constant 3 : i32
    %45 = arith.addi %3, %c3_i32 : i32
    %46 = vector.broadcast %45 : i32 to vector<304x1xi32>
    %47 = arith.cmpi eq, %6, %46 : vector<304x1xi32>
    %cst_17 = arith.constant 0xFF800000 : f32
    %48 = vector.shape_cast %47 : vector<304x1xi1> to vector<304x1xi1>
    %49 = vector.broadcast %48 : vector<304x1xi1> to vector<304x128xi1>
    %50 = vector.broadcast %cst_17 : f32 to vector<304x128xf32>
    %51 = arith.select %49, %4, %50 : vector<304x128xi1>, vector<304x128xf32>
    %cst_18 = arith.constant dense<0xFF800000> : vector<128xf32>
    %52 = vector.multi_reduction <maximumf>, %51, %cst_18 [0] : vector<304x128xf32> to vector<128xf32>
    %53 = vector.shape_cast %52 : vector<128xf32> to vector<1x128xf32>
    %c4_i32 = arith.constant 4 : i32
    %54 = arith.addi %3, %c4_i32 : i32
    %55 = vector.broadcast %54 : i32 to vector<304x1xi32>
    %56 = arith.cmpi eq, %6, %55 : vector<304x1xi32>
    %cst_19 = arith.constant 0xFF800000 : f32
    %57 = vector.shape_cast %56 : vector<304x1xi1> to vector<304x1xi1>
    %58 = vector.broadcast %57 : vector<304x1xi1> to vector<304x128xi1>
    %59 = vector.broadcast %cst_19 : f32 to vector<304x128xf32>
    %60 = arith.select %58, %4, %59 : vector<304x128xi1>, vector<304x128xf32>
    %cst_20 = arith.constant dense<0xFF800000> : vector<128xf32>
    %61 = vector.multi_reduction <maximumf>, %60, %cst_20 [0] : vector<304x128xf32> to vector<128xf32>
    %62 = vector.shape_cast %61 : vector<128xf32> to vector<1x128xf32>
    %c5_i32 = arith.constant 5 : i32
    %63 = arith.addi %3, %c5_i32 : i32
    %64 = vector.broadcast %63 : i32 to vector<304x1xi32>
    %65 = arith.cmpi eq, %6, %64 : vector<304x1xi32>
    %cst_21 = arith.constant 0xFF800000 : f32
    %66 = vector.shape_cast %65 : vector<304x1xi1> to vector<304x1xi1>
    %67 = vector.broadcast %66 : vector<304x1xi1> to vector<304x128xi1>
    %68 = vector.broadcast %cst_21 : f32 to vector<304x128xf32>
    %69 = arith.select %67, %4, %68 : vector<304x128xi1>, vector<304x128xf32>
    %cst_22 = arith.constant dense<0xFF800000> : vector<128xf32>
    %70 = vector.multi_reduction <maximumf>, %69, %cst_22 [0] : vector<304x128xf32> to vector<128xf32>
    %71 = vector.shape_cast %70 : vector<128xf32> to vector<1x128xf32>
    %c6_i32 = arith.constant 6 : i32
    %72 = arith.addi %3, %c6_i32 : i32
    %73 = vector.broadcast %72 : i32 to vector<304x1xi32>
    %74 = arith.cmpi eq, %6, %73 : vector<304x1xi32>
    %cst_23 = arith.constant 0xFF800000 : f32
    %75 = vector.shape_cast %74 : vector<304x1xi1> to vector<304x1xi1>
    %76 = vector.broadcast %75 : vector<304x1xi1> to vector<304x128xi1>
    %77 = vector.broadcast %cst_23 : f32 to vector<304x128xf32>
    %78 = arith.select %76, %4, %77 : vector<304x128xi1>, vector<304x128xf32>
    %cst_24 = arith.constant dense<0xFF800000> : vector<128xf32>
    %79 = vector.multi_reduction <maximumf>, %78, %cst_24 [0] : vector<304x128xf32> to vector<128xf32>
    %80 = vector.shape_cast %79 : vector<128xf32> to vector<1x128xf32>
    %c7_i32 = arith.constant 7 : i32
    %81 = arith.addi %3, %c7_i32 : i32
    %82 = vector.broadcast %81 : i32 to vector<304x1xi32>
    %83 = arith.cmpi eq, %6, %82 : vector<304x1xi32>
    %cst_25 = arith.constant 0xFF800000 : f32
    %84 = vector.shape_cast %83 : vector<304x1xi1> to vector<304x1xi1>
    %85 = vector.broadcast %84 : vector<304x1xi1> to vector<304x128xi1>
    %86 = vector.broadcast %cst_25 : f32 to vector<304x128xf32>
    %87 = arith.select %85, %4, %86 : vector<304x128xi1>, vector<304x128xf32>
    %cst_26 = arith.constant dense<0xFF800000> : vector<128xf32>
    %88 = vector.multi_reduction <maximumf>, %87, %cst_26 [0] : vector<304x128xf32> to vector<128xf32>
    %89 = vector.shape_cast %88 : vector<128xf32> to vector<1x128xf32>
    %c0_27 = arith.constant 0 : index
    %c0_28 = arith.constant 0 : index
    %90 = vector.load %arg9[%c0_27, %c0_28] : memref<8x128xf32, #tpu.memory_space<vmem>>, vector<8x128xf32>
    %91 = tpu.concatenate %26, %35, %44, %53, %62, %71, %80, %89 in 0 : vector<1x128xf32>, vector<1x128xf32>, vector<1x128xf32>, vector<1x128xf32>, vector<1x128xf32>, vector<1x128xf32>, vector<1x128xf32>, vector<1x128xf32> -> vector<8x128xf32>
    %92 = arith.maximumf %90, %91 : vector<8x128xf32>
    %c0_29 = arith.constant 0 : index
    %c0_30 = arith.constant 0 : index
    %93 = vector.load %arg9[%c0_29, %c0_30] : memref<8x128xf32, #tpu.memory_space<vmem>>, vector<8x128xf32>
    tpu.vector_store %arg9[%c0_29, %c0_30], %92 {strides = array<i32>} : memref<8x128xf32, #tpu.memory_space<vmem>>, vector<8x128xf32>,
    %c0_i32_31 = arith.constant 0 : i32
    %94 = arith.cmpi eq, %arg3, %c0_i32_31 : i32
    %95 = arith.extui %94 : i1 to i32
    %c0_i32_32 = arith.constant 0 : i32
    %96 = arith.cmpi ne, %95, %c0_i32_32 : i32
    scf.if %96 {
      %c0_33 = arith.constant 0 : index
      %c0_34 = arith.constant 0 : index
      %97 = vector.load %arg9[%c0_33, %c0_34] : memref<8x128xf32, #tpu.memory_space<vmem>>, vector<8x128xf32>
      %98 = vector.shape_cast %97 : vector<8x128xf32> to vector<1x8x128xf32>
      %c0_35 = arith.constant 0 : index
      %c0_36 = arith.constant 0 : index
      %c0_37 = arith.constant 0 : index
      %99 = vector.load %arg7[%c0_35, %c0_36, %c0_37] : memref<1x8x128xf32, #tpu.memory_space<vmem>>, vector<1x8x128xf32>
      tpu.vector_store %arg7[%c0_35, %c0_36, %c0_37], %98 {strides = array<i32>} : memref<1x8x128xf32, #tpu.memory_space<vmem>>, vector<1x8x128xf32>,
      %c0_38 = arith.constant 0 : index
      %c0_39 = arith.constant 0 : index
      %100 = vector.load %arg10[%c0_38, %c0_39] : memref<8x128xf32, #tpu.memory_space<vmem>>, vector<8x128xf32>
      %101 = vector.shape_cast %100 : vector<8x128xf32> to vector<1x8x128xf32>
      %c0_40 = arith.constant 0 : index
      %c0_41 = arith.constant 0 : index
      %c0_42 = arith.constant 0 : index
      %102 = vector.load %arg8[%c0_40, %c0_41, %c0_42] : memref<1x8x128xf32, #tpu.memory_space<vmem>>, vector<1x8x128xf32>
      tpu.vector_store %arg8[%c0_40, %c0_41, %c0_42], %101 {strides = array<i32>} : memref<1x8x128xf32, #tpu.memory_space<vmem>>, vector<1x8x128xf32>,
    } else {
    }
    return
  }
  func.func @transform_0(%arg0: i32, %arg1: i32, %arg2: i32, %arg3: i32) -> (i32, i32) {
    %c1_i32 = arith.constant 1 : i32
    %0 = arith.muli %arg0, %c1_i32 : i32
    %1 = arith.addi %0, %arg3 : i32
    %c0_i32 = arith.constant 0 : i32
    %c0_i32_0 = arith.constant 0 : i32
    return %c0_i32, %1 : i32, i32
  }
  func.func @transform_1(%arg0: i32, %arg1: i32, %arg2: i32, %arg3: i32) -> (i32, i32) {
    %c1_i32 = arith.constant 1 : i32
    %0 = arith.muli %arg0, %c1_i32 : i32
    %1 = arith.addi %0, %arg3 : i32
    %c0_i32 = arith.constant 0 : i32
    %c0_i32_0 = arith.constant 0 : i32
    return %1, %c0_i32 : i32, i32
  }
  func.func @transform_2(%arg0: i32, %arg1: i32, %arg2: i32, %arg3: i32) -> (i32, i32) {
    %c1_i32 = arith.constant 1 : i32
    %0 = arith.muli %arg0, %c1_i32 : i32
    %1 = arith.addi %0, %arg3 : i32
    %c0_i32 = arith.constant 0 : i32
    return %1, %arg2 : i32, i32
  }
  func.func @transform_3(%arg0: i32, %arg1: i32, %arg2: i32, %arg3: i32) -> (i32, i32, i32) {
    %c0_i32 = arith.constant 0 : i32
    return %arg0, %arg1, %arg2 : i32, i32, i32
  }
  func.func @transform_4(%arg0: i32, %arg1: i32, %arg2: i32, %arg3: i32) -> (i32, i32, i32) {
    %c0_i32 = arith.constant 0 : i32
    return %arg0, %arg1, %arg2 : i32, i32, i32
  }
}

</mosaic_0001>

<llo_original>
// kernel: permut_inv_gp.1
$region0: #{permut_inv_gp.1}
  #allocation0 [shape = 'u32[]', space=smem, size = 0x4, offset = 0x4, fixed_abs, tag = 'smem constant byte address 0x4 - core index']
  #allocation1 [shape = 'u32[144,128]{1,0:T(1,128)}', space=vmem, size = 0x12000, scoped, tag = 'internal scratch']
  #allocation2 [shape = 'f32[8,128]{1,0:T(8,128)}', space=vmem, size = 0x1000, scoped, tag = 'scratch operand']
  #allocation3 [shape = 'f32[8,128]{1,0:T(8,128)}', space=vmem, size = 0x1000, scoped, tag = 'scratch operand']
  %s0 = inlined_call_operand.vmem [shape: s32[1,304], index: 0, kind: input, shape index: {}]
  %s1 = inlined_call_operand.vmem [shape: s32[304,1], index: 1, kind: input, shape index: {}]
  %s2 = inlined_call_operand.vmem [shape: f32[304,128], index: 2, kind: input, shape index: {}]
  %s3 = inlined_call_operand.vmem [shape: f32[1,8,128], index: 3, kind: output, shape index: {0}]
  %s4 = inlined_call_operand.vmem [shape: f32[1,8,128], index: 4, kind: output, shape index: {1}]
  %5 = xla_tuple %s3, %s4
  %s6 = sld [smem:[#allocation0]]
  $region38: #{permut_inv_gp.1} parent=0
    _
  %s8 = ssub.s32 1, %s6
  %s9 = scalar_select 0, %s8, %s6
  // Predicated region
  $region2: #{permut_inv_gp.1} parent=0 // pred_check
    _
  $region3: #{permut_inv_gp.1} parent=0 // pred_check_branch
    %11 = sbr.rel (0) target = $region5
  $region4: #{permut_inv_gp.1} parent=0 // pred_region
    %s12 = sadd.s32 0, 0
    %s13 = smul.u32 3, %s12
    %p14 = scmp.lt.s32.totalorder %s13, 2
    %s15 = scalar_select %p14, %s13, 2
    %s16 = scalar_lea.vmem %s0, %s15
    %s17 = sadd.s32 0, 0
    %s18 = smul.u32 3, %s17
  $region5: #{permut_inv_gp.1} parent=0 // pred_fallthru
    _
  // Predicated region
  $region6: #{permut_inv_gp.1} parent=0 // pred_check
    _
  $region7: #{permut_inv_gp.1} parent=0 // pred_check_branch
    %20 = sbr.rel (0) target = $region9
  $region8: #{permut_inv_gp.1} parent=0 // pred_region
    %s21 = sadd.s32 0, 0
    %s22 = smul.u32 38, %s21
    %p23 = scmp.lt.s32.totalorder %s22, 37
    %s24 = scalar_select %p23, %s22, 37
    %s25 = smul.addr %s24, 8
    %s26 = scalar_lea.vmem %s1, %s25
    %s27 = sadd.s32 0, 0
    %s28 = smul.u32 38, %s27
  $region9: #{permut_inv_gp.1} parent=0 // pred_fallthru
    _
  // Predicated region
  $region10: #{permut_inv_gp.1} parent=0 // pred_check
    _
  $region11: #{permut_inv_gp.1} parent=0 // pred_check_branch
    %30 = sbr.rel (0) target = $region13
  $region12: #{permut_inv_gp.1} parent=0 // pred_region
    %s31 = sadd.s32 0, 0
    %s32 = smul.u32 38, %s31
    %p33 = scmp.lt.s32.totalorder %s32, 37
    %s34 = scalar_select %p33, %s32, 37
    %s35 = smul.addr %s34, 8
    %s36 = scalar_lea.vmem %s2, %s35
    %s37 = sadd.s32 0, 0
    %s38 = smul.u32 38, %s37
  $region13: #{permut_inv_gp.1} parent=0 // pred_fallthru
    _
  %s39 = sadd.s32 0, 0
  %s40 = smul.u32 3, %s39
  %p41 = scmp.lt.s32.totalorder %s40, 2
  %s42 = scalar_select %p41, %s40, 2
  %s43 = scalar_lea.vmem %s0, %s42
  %s44 = sadd.s32 0, 0
  %s45 = smul.u32 38, %s44
  %p46 = scmp.lt.s32.totalorder %s45, 37
  %s47 = scalar_select %p46, %s45, 37
  %s48 = smul.addr %s47, 8
  %s49 = scalar_lea.vmem %s1, %s48
  %s50 = sadd.s32 0, 0
  %s51 = smul.u32 38, %s50
  %p52 = scmp.lt.s32.totalorder %s51, 37
  %s53 = scalar_select %p52, %s51, 37
  %s54 = smul.addr %s53, 8
  %s55 = scalar_lea.vmem %s2, %s54
  %s56 = sadd.s32 0, 0
  %s57 = smul.u32 3, %s56
  %p58 = scmp.lt.s32.totalorder %s57, 2
  %s59 = scalar_select %p58, %s57, 2
  %s60 = scalar_lea.vmem %s0, %s59
  %s61 = sadd.s32 0, 0
  %s62 = smul.u32 3, %s61
  %s63 = sadd.s32 0, 0
  %s64 = smul.u32 38, %s63
  %p65 = scmp.lt.s32.totalorder %s64, 37
  %s66 = scalar_select %p65, %s64, 37
  %s67 = smul.addr %s66, 8
  %s68 = scalar_lea.vmem %s1, %s67
  %s69 = sadd.s32 0, 0
  %s70 = smul.u32 38, %s69
  %s71 = sadd.s32 0, 0
  %s72 = smul.u32 38, %s71
  %p73 = scmp.lt.s32.totalorder %s72, 37
  %s74 = scalar_select %p73, %s72, 37
  %s75 = smul.addr %s74, 8
  %s76 = scalar_lea.vmem %s2, %s75
  %s77 = sadd.s32 0, 0
  %s78 = smul.u32 38, %s77
  %p79 = scmp.eq.s32.totalorder 0, 0
  // Predicated region
  $region14: #{permut_inv_gp.1} parent=0 // pred_check
    %p80 = pneg %p79
  $region15: #{permut_inv_gp.1} parent=0 // pred_check_branch
    %82 = sbr.rel (%p80) target = $region17
  $region16: #{permut_inv_gp.1} parent=0 // pred_region
    %83 = vst [vmem:[#allocation2] sm:$0xff] -inf
    %84 = vst [vmem:[#allocation3] sm:$0xff] 0.0
  $region17: #{permut_inv_gp.1} parent=0 // pred_fallthru
    _
  %s85 = smul.u32 0, 8
  %v86 = vld [vmem:[%s76] sm:$0xff]
  %v87 = vld [vmem:[%s76 + $0x8] sm:$0xff]
  %v88 = vld [vmem:[%s76 + $0x10] sm:$0xff]
  %v89 = vld [vmem:[%s76 + $0x18] sm:$0xff]
  %v90 = vld [vmem:[%s76 + $0x20] sm:$0xff]
  %v91 = vld [vmem:[%s76 + $0x28] sm:$0xff]
  %v92 = vld [vmem:[%s76 + $0x30] sm:$0xff]
  %v93 = vld [vmem:[%s76 + $0x38] sm:$0xff]
  %v94 = vld [vmem:[%s76 + $0x40] sm:$0xff]
  %v95 = vld [vmem:[%s76 + $0x48] sm:$0xff]
  %v96 = vld [vmem:[%s76 + $0x50] sm:$0xff]
  %v97 = vld [vmem:[%s76 + $0x58] sm:$0xff]
  %v98 = vld [vmem:[%s76 + $0x60] sm:$0xff]
  %v99 = vld [vmem:[%s76 + $0x68] sm:$0xff]
  %v100 = vld [vmem:[%s76 + $0x70] sm:$0xff]
  %v101 = vld [vmem:[%s76 + $0x78] sm:$0xff]
  %v102 = vld [vmem:[%s76 + $0x80] sm:$0xff]
  %v103 = vld [vmem:[%s76 + $0x88] sm:$0xff]
  %v104 = vld [vmem:[%s76 + $0x90] sm:$0xff]
  %v105 = vld [vmem:[%s76 + $0x98] sm:$0xff]
  %v106 = vld [vmem:[%s76 + $0xa0] sm:$0xff]
  %v107 = vld [vmem:[%s76 + $0xa8] sm:$0xff]
  %v108 = vld [vmem:[%s76 + $0xb0] sm:$0xff]
  %v109 = vld [vmem:[%s76 + $0xb8] sm:$0xff]
  %v110 = vld [vmem:[%s76 + $0xc0] sm:$0xff]
  %v111 = vld [vmem:[%s76 + $0xc8] sm:$0xff]
  %v112 = vld [vmem:[%s76 + $0xd0] sm:$0xff]
  %v113 = vld [vmem:[%s76 + $0xd8] sm:$0xff]
  %v114 = vld [vmem:[%s76 + $0xe0] sm:$0xff]
  %v115 = vld [vmem:[%s76 + $0xe8] sm:$0xff]
  %v116 = vld [vmem:[%s76 + $0xf0] sm:$0xff]
  %v117 = vld [vmem:[%s76 + $0xf8] sm:$0xff]
  %v118 = vld [vmem:[%s76 + $0x100] sm:$0xff]
  %v119 = vld [vmem:[%s76 + $0x108] sm:$0xff]
  %v120 = vld [vmem:[%s76 + $0x110] sm:$0xff]
  %v121 = vld [vmem:[%s76 + $0x118] sm:$0xff]
  %v122 = vld [vmem:[%s76 + $0x120] sm:$0xff]
  %v123 = vld [vmem:[%s76 + $0x128] sm:$0xff]
  %v124 = vld [vmem:[%s60] sm:$0x7]
  %v125 = vld [vmem:[%s68] sm:$0xff]
  %v126 = vld [vmem:[%s68 + $0x8] sm:$0xff]
  %v127 = vld [vmem:[%s68 + $0x10] sm:$0xff]
  %v128 = vld [vmem:[%s68 + $0x18] sm:$0xff]
  %v129 = vld [vmem:[%s68 + $0x20] sm:$0xff]
  %v130 = vld [vmem:[%s68 + $0x28] sm:$0xff]
  %v131 = vld [vmem:[%s68 + $0x30] sm:$0xff]
  %v132 = vld [vmem:[%s68 + $0x38] sm:$0xff]
  %v133 = vld [vmem:[%s68 + $0x40] sm:$0xff]
  %v134 = vld [vmem:[%s68 + $0x48] sm:$0xff]
  %v135 = vld [vmem:[%s68 + $0x50] sm:$0xff]
  %v136 = vld [vmem:[%s68 + $0x58] sm:$0xff]
  %v137 = vld [vmem:[%s68 + $0x60] sm:$0xff]
  %v138 = vld [vmem:[%s68 + $0x68] sm:$0xff]
  %v139 = vld [vmem:[%s68 + $0x70] sm:$0xff]
  %v140 = vld [vmem:[%s68 + $0x78] sm:$0xff]
  %v141 = vld [vmem:[%s68 + $0x80] sm:$0xff]
  %v142 = vld [vmem:[%s68 + $0x88] sm:$0xff]
  %v143 = vld [vmem:[%s68 + $0x90] sm:$0xff]
  %v144 = vld [vmem:[%s68 + $0x98] sm:$0xff]
  %v145 = vld [vmem:[%s68 + $0xa0] sm:$0xff]
  %v146 = vld [vmem:[%s68 + $0xa8] sm:$0xff]
  %v147 = vld [vmem:[%s68 + $0xb0] sm:$0xff]
  %v148 = vld [vmem:[%s68 + $0xb8] sm:$0xff]
  %v149 = vld [vmem:[%s68 + $0xc0] sm:$0xff]
  %v150 = vld [vmem:[%s68 + $0xc8] sm:$0xff]
  %v151 = vld [vmem:[%s68 + $0xd0] sm:$0xff]
  %v152 = vld [vmem:[%s68 + $0xd8] sm:$0xff]
  %v153 = vld [vmem:[%s68 + $0xe0] sm:$0xff]
  %v154 = vld [vmem:[%s68 + $0xe8] sm:$0xff]
  %v155 = vld [vmem:[%s68 + $0xf0] sm:$0xff]
  %v156 = vld [vmem:[%s68 + $0xf8] sm:$0xff]
  %v157 = vld [vmem:[%s68 + $0x100] sm:$0xff]
  %v158 = vld [vmem:[%s68 + $0x108] sm:$0xff]
  %v159 = vld [vmem:[%s68 + $0x110] sm:$0xff]
  %v160 = vld [vmem:[%s68 + $0x118] sm:$0xff]
  %v161 = vld [vmem:[%s68 + $0x120] sm:$0xff]
  %v162 = vld [vmem:[%s68 + $0x128] sm:$0xff]
  %v163 = vlaneseq
  %v164 = vshrl.u32 %v163, 7
  %v165 = vstv %s85
  %v166 = vadd.s32 %v165, %v164
  %v167 = vlaneseq
  %v168 = vshrl.u32 %v167, 7
  %v169 = vsub.s32 0, %v168
  %v170 = vrot.slane %v124, %v169
  %v171 = vlaneseq
  %v172 = vshrl.u32 %v171, 7
  %v173 = vsub.s32 1, %v172
  %v174 = vrot.slane %v124, %v173
  %v175 = vlaneseq
  %v176 = vshrl.u32 %v175, 7
  %v177 = vsub.s32 2, %v176
  %v178 = vrot.slane %v124, %v177
  %vm179 = vcmp.eq.s32.totalorder %v166, %v170
  %vm180 = vcmp.eq.s32.totalorder %v166, %v174
  %vm181 = vcmp.eq.s32.totalorder %v166, %v178
  %v182 = vsel %vm179, 1, 0
  %v183 = vsel %vm180, 1, 0
  %v184 = vsel %vm181, 1, 0
  %v185 = vcvt.s32.f32 %v182
  %v186 = vcvt.s32.f32 %v183
  %v187 = vcvt.s32.f32 %v184
  %v188 = vld [vmem:[#allocation3] sm:$0xff]
  %vm189 = vcmask 392192
  %v191 = vsel %vm189, %v187, 0
  %193 = vmatprep.subr.mxu0 0.0
  %194 = vmatpush1.msra.mxu0 %v86
  %195 = vmatprep.subr.mxu0 0.0
  %196 = vmatpush1.msra.mxu0 %v87
  %197 = vmatprep.subr.mxu0 0.0
  %198 = vmatpush1.msra.mxu0 %v88
  %199 = vmatprep.subr.mxu0 0.0
  %200 = vmatpush1.msra.mxu0 %v89
  %201 = vmatprep.subr.mxu0 0.0
  %202 = vmatpush1.msra.mxu0 %v90
  %203 = vmatprep.subr.mxu0 0.0
  %204 = vmatpush1.msra.mxu0 %v91
  %205 = vmatprep.subr.mxu0 0.0
  %206 = vmatpush1.msra.mxu0 %v92
  %207 = vmatprep.subr.mxu0 0.0
  %208 = vmatpush1.msra.mxu0 %v93
  %209 = vmatprep.subr.mxu0 0.0
  %210 = vmatpush1.msra.mxu0 %v94
  %211 = vmatprep.subr.mxu0 0.0
  %212 = vmatpush1.msra.mxu0 %v95
  %213 = vmatprep.subr.mxu0 0.0
  %214 = vmatpush1.msra.mxu0 %v96
  %215 = vmatprep.subr.mxu0 0.0
  %216 = vmatpush1.msra.mxu0 %v97
  %217 = vmatprep.subr.mxu0 0.0
  %218 = vmatpush1.msra.mxu0 %v98
  %219 = vmatprep.subr.mxu0 0.0
  %220 = vmatpush1.msra.mxu0 %v99
  %221 = vmatprep.subr.mxu0 0.0
  %222 = vmatpush1.msra.mxu0 %v100
  %223 = vmatprep.subr.mxu0 0.0
  %224 = vmatpush1.msra.mxu0 %v101
  %225 = vmatprep.subr.mxu0 0.0
  %226 = vmatpush1.msra.mxu0 %v102
  %227 = vmatprep.subr.mxu0 0.0
  %228 = vmatpush1.msra.mxu0 %v103
  %229 = vmatprep.subr.mxu0 0.0
  %230 = vmatpush1.msra.mxu0 %v104
  %231 = vmatprep.subr.mxu0 0.0
  %232 = vmatpush1.msra.mxu0 %v105
  %233 = vmatprep.subr.mxu0 0.0
  %234 = vmatpush1.msra.mxu0 %v106
  %235 = vmatprep.subr.mxu0 0.0
  %236 = vmatpush1.msra.mxu0 %v107
  %237 = vmatprep.subr.mxu0 0.0
  %238 = vmatpush1.msra.mxu0 %v108
  %239 = vmatprep.subr.mxu0 0.0
  %240 = vmatpush1.msra.mxu0 %v109
  %241 = vmatprep.subr.mxu0 0.0
  %242 = vmatpush1.msra.mxu0 %v110
  %243 = vmatprep.subr.mxu0 0.0
  %244 = vmatpush1.msra.mxu0 %v111
  %245 = vmatprep.subr.mxu0 0.0
  %246 = vmatpush1.msra.mxu0 %v112
  %247 = vmatprep.subr.mxu0 0.0
  %248 = vmatpush1.msra.mxu0 %v113
  %249 = vmatprep.subr.mxu0 0.0
  %250 = vmatpush1.msra.mxu0 %v114
  %251 = vmatprep.subr.mxu0 0.0
  %252 = vmatpush1.msra.mxu0 %v115
  %253 = vmatprep.subr.mxu0 0.0
  %254 = vmatpush1.msra.mxu0 %v116
  %255 = vmatprep.subr.mxu0 0.0
  %256 = vmatpush1.msra.mxu0 %v117
  %257 = vmatprep.mubr.f32.mxu0 %v186
  %258 = vmatmul.mubr.f32.gmra.mrb[0].mxu0 %v185
  %v259 = vpop.f32.mrb[0].mxu0
  %v260 = vadd.f32 0.0, %v259
  %v261 = vpop.f32.mrb[0].mxu0
  %262 = vdwg.mxu0
  %263 = vmatprep.subr.mxu0 0.0
  %264 = vmatpush1.msra.mxu0 %v118
  %265 = vmatprep.subr.mxu0 0.0
  %266 = vmatpush1.msra.mxu0 %v119
  %267 = vmatprep.subr.mxu0 0.0
  %268 = vmatpush1.msra.mxu0 %v120
  %269 = vmatprep.subr.mxu0 0.0
  %270 = vmatpush1.msra.mxu0 %v121
  %271 = vmatprep.subr.mxu0 0.0
  %272 = vmatpush1.msra.mxu0 %v122
  %273 = vmatprep.subr.mxu0 0.0
  %274 = vmatpush1.msra.mxu0 %v123
  %275 = vmatprep.subr.mxu0 0.0
  %276 = vmatpush1.msra.mxu0 0.0
  %277 = vmatprep.subr.mxu0 0.0
  %278 = vmatpush1.msra.mxu0 0.0
  %279 = vmatprep.subr.mxu0 0.0
  %280 = vmatpush1.msra.mxu0 0.0
  %281 = vmatprep.subr.mxu0 0.0
  %282 = vmatpush1.msra.mxu0 0.0
  %283 = vmatprep.subr.mxu0 0.0
  %284 = vmatpush1.msra.mxu0 0.0
  %285 = vmatprep.subr.mxu0 0.0
  %286 = vmatpush1.msra.mxu0 0.0
  %287 = vmatprep.subr.mxu0 0.0
  %288 = vmatpush1.msra.mxu0 0.0
  %289 = vmatprep.subr.mxu0 0.0
  %290 = vmatpush1.msra.mxu0 0.0
  %291 = vmatprep.subr.mxu0 0.0
  %292 = vmatpush1.msra.mxu0 0.0
  %293 = vmatprep.subr.mxu0 0.0
  %294 = vmatpush1.msra.mxu0 0.0
  %295 = vmatprep.subr.mxu0 0.0
  %296 = vmatpush1.msra.mxu0 0.0
  %297 = vmatprep.subr.mxu0 0.0
  %298 = vmatpush1.msra.mxu0 0.0
  %299 = vmatprep.subr.mxu0 0.0
  %300 = vmatpush1.msra.mxu0 0.0
  %301 = vmatprep.subr.mxu0 0.0
  %302 = vmatpush1.msra.mxu0 0.0
  %303 = vmatprep.subr.mxu0 0.0
  %304 = vmatpush1.msra.mxu0 0.0
  %305 = vmatprep.subr.mxu0 0.0
  %306 = vmatpush1.msra.mxu0 0.0
  %307 = vmatprep.subr.mxu0 0.0
  %308 = vmatpush1.msra.mxu0 0.0
  %309 = vmatprep.subr.mxu0 0.0
  %310 = vmatpush1.msra.mxu0 0.0
  %311 = vmatprep.subr.mxu0 0.0
  %312 = vmatpush1.msra.mxu0 0.0
  %313 = vmatprep.subr.mxu0 0.0
  %314 = vmatpush1.msra.mxu0 0.0
  %315 = vmatprep.subr.mxu0 0.0
  %316 = vmatpush1.msra.mxu0 0.0
  %317 = vmatprep.subr.mxu0 0.0
  %318 = vmatpush1.msra.mxu0 0.0
  %319 = vmatprep.subr.mxu0 0.0
  %320 = vmatpush1.msra.mxu0 0.0
  %321 = vmatprep.subr.mxu0 0.0
  %322 = vmatpush1.msra.mxu0 0.0
  %323 = vmatprep.subr.mxu0 0.0
  %324 = vmatpush1.msra.mxu0 0.0
  %325 = vmatprep.subr.mxu0 0.0
  %326 = vmatpush1.msra.mxu0 0.0
  %327 = vmatprep.mubr.f32.mxu0 0.0
  %328 = vmatmul.mubr.f32.gmra.mrb[0].mxu0 %v191
  %v329 = vpop.f32.mrb[0].mxu0
  %v330 = vadd.f32 %v260, %v329
  %v331 = vpop.f32.mrb[0].mxu0
  %332 = vdwg.mxu0
  %v333 = vadd.f32 %v188, %v330
  %334 = vst [vmem:[#allocation3] sm:$0xff] %v333
  %vm335 = vcmp.eq.s32.totalorder %v125, %v165
  %vm336 = vcmp.eq.s32.totalorder %v126, %v165
  %vm337 = vcmp.eq.s32.totalorder %v127, %v165
  %vm338 = vcmp.eq.s32.totalorder %v128, %v165
  %vm339 = vcmp.eq.s32.totalorder %v129, %v165
  %vm340 = vcmp.eq.s32.totalorder %v130, %v165
  %vm341 = vcmp.eq.s32.totalorder %v131, %v165
  %vm342 = vcmp.eq.s32.totalorder %v132, %v165
  %vm343 = vcmp.eq.s32.totalorder %v133, %v165
  %vm344 = vcmp.eq.s32.totalorder %v134, %v165
  %vm345 = vcmp.eq.s32.totalorder %v135, %v165
  %vm346 = vcmp.eq.s32.totalorder %v136, %v165
  %vm347 = vcmp.eq.s32.totalorder %v137, %v165
  %vm348 = vcmp.eq.s32.totalorder %v138, %v165
  %vm349 = vcmp.eq.s32.totalorder %v139, %v165
  %vm350 = vcmp.eq.s32.totalorder %v140, %v165
  %vm351 = vcmp.eq.s32.totalorder %v141, %v165
  %vm352 = vcmp.eq.s32.totalorder %v142, %v165
  %vm353 = vcmp.eq.s32.totalorder %v143, %v165
  %vm354 = vcmp.eq.s32.totalorder %v144, %v165
  %vm355 = vcmp.eq.s32.totalorder %v145, %v165
  %vm356 = vcmp.eq.s32.totalorder %v146, %v165
  %vm357 = vcmp.eq.s32.totalorder %v147, %v165
  %vm358 = vcmp.eq.s32.totalorder %v148, %v165
  %vm359 = vcmp.eq.s32.totalorder %v149, %v165
  %vm360 = vcmp.eq.s32.totalorder %v150, %v165
  %vm361 = vcmp.eq.s32.totalorder %v151, %v165
  %vm362 = vcmp.eq.s32.totalorder %v152, %v165
  %vm363 = vcmp.eq.s32.totalorder %v153, %v165
  %vm364 = vcmp.eq.s32.totalorder %v154, %v165
  %vm365 = vcmp.eq.s32.totalorder %v155, %v165
  %vm366 = vcmp.eq.s32.totalorder %v156, %v165
  %vm367 = vcmp.eq.s32.totalorder %v157, %v165
  %vm368 = vcmp.eq.s32.totalorder %v158, %v165
  %vm369 = vcmp.eq.s32.totalorder %v159, %v165
  %vm370 = vcmp.eq.s32.totalorder %v160, %v165
  %vm371 = vcmp.eq.s32.totalorder %v161, %v165
  %vm372 = vcmp.eq.s32.totalorder %v162, %v165
  %v373 = vsel %vm335, 1, 0
  %v374 = vsel %vm336, 1, 0
  %v375 = vsel %vm337, 1, 0
  %v376 = vsel %vm338, 1, 0
  %v377 = vsel %vm339, 1, 0
  %v378 = vsel %vm340, 1, 0
  %v379 = vsel %vm341, 1, 0
  %v380 = vsel %vm342, 1, 0
  %v381 = vsel %vm343, 1, 0
  %v382 = vsel %vm344, 1, 0
  %v383 = vsel %vm345, 1, 0
  %v384 = vsel %vm346, 1, 0
  %v385 = vsel %vm347, 1, 0
  %v386 = vsel %vm348, 1, 0
  %v387 = vsel %vm349, 1, 0
  %v388 = vsel %vm350, 1, 0
  %v389 = vsel %vm351, 1, 0
  %v390 = vsel %vm352, 1, 0
  %v391 = vsel %vm353, 1, 0
  %v392 = vsel %vm354, 1, 0
  %v393 = vsel %vm355, 1, 0
  %v394 = vsel %vm356, 1, 0
  %v395 = vsel %vm357, 1, 0
  %v396 = vsel %vm358, 1, 0
  %v397 = vsel %vm359, 1, 0
  %v398 = vsel %vm360, 1, 0
  %v399 = vsel %vm361, 1, 0
  %v400 = vsel %vm362, 1, 0
  %v401 = vsel %vm363, 1, 0
  %v402 = vsel %vm364, 1, 0
  %v403 = vsel %vm365, 1, 0
  %v404 = vsel %vm366, 1, 0
  %v405 = vsel %vm367, 1, 0
  %v406 = vsel %vm368, 1, 0
  %v407 = vsel %vm369, 1, 0
  %v408 = vsel %vm370, 1, 0
  %v409 = vsel %vm371, 1, 0
  %v410 = vsel %vm372, 1, 0
  %411 = vset.pattern.permute.xlu0 0
  %412 = vperm.xlu0 %411, %v373
  %v413 = vpop.permute.xlu0 %412
  %414 = vset.pattern.permute.xlu0 0
  %415 = vperm.xlu0 %414, %v374
  %v416 = vpop.permute.xlu0 %415
  %417 = vset.pattern.permute.xlu0 0
  %418 = vperm.xlu0 %417, %v375
  %v419 = vpop.permute.xlu0 %418
  %420 = vset.pattern.permute.xlu0 0
  %421 = vperm.xlu0 %420, %v376
  %v422 = vpop.permute.xlu0 %421
  %423 = vset.pattern.permute.xlu0 0
  %424 = vperm.xlu0 %423, %v377
  %v425 = vpop.permute.xlu0 %424
  %426 = vset.pattern.permute.xlu0 0
  %427 = vperm.xlu0 %426, %v378
  %v428 = vpop.permute.xlu0 %427
  %429 = vset.pattern.permute.xlu0 0
  %430 = vperm.xlu0 %429, %v379
  %v431 = vpop.permute.xlu0 %430
  %432 = vset.pattern.permute.xlu0 0
  %433 = vperm.xlu0 %432, %v380
  %v434 = vpop.permute.xlu0 %433
  %435 = vset.pattern.permute.xlu0 0
  %436 = vperm.xlu0 %435, %v381
  %v437 = vpop.permute.xlu0 %436
  %438 = vset.pattern.permute.xlu0 0
  %439 = vperm.xlu0 %438, %v382
  %v440 = vpop.permute.xlu0 %439
  %441 = vset.pattern.permute.xlu0 0
  %442 = vperm.xlu0 %441, %v383
  %v443 = vpop.permute.xlu0 %442
  %444 = vset.pattern.permute.xlu0 0
  %445 = vperm.xlu0 %444, %v384
  %v446 = vpop.permute.xlu0 %445
  %447 = vset.pattern.permute.xlu0 0
  %448 = vperm.xlu0 %447, %v385
  %v449 = vpop.permute.xlu0 %448
  %450 = vset.pattern.permute.xlu0 0
  %451 = vperm.xlu0 %450, %v386
  %v452 = vpop.permute.xlu0 %451
  %453 = vset.pattern.permute.xlu0 0
  %454 = vperm.xlu0 %453, %v387
  %v455 = vpop.permute.xlu0 %454
  %456 = vset.pattern.permute.xlu0 0
  %457 = vperm.xlu0 %456, %v388
  %v458 = vpop.permute.xlu0 %457
  %459 = vset.pattern.permute.xlu0 0
  %460 = vperm.xlu0 %459, %v389
  %v461 = vpop.permute.xlu0 %460
  %462 = vset.pattern.permute.xlu0 0
  %463 = vperm.xlu0 %462, %v390
  %v464 = vpop.permute.xlu0 %463
  %465 = vset.pattern.permute.xlu0 0
  %466 = vperm.xlu0 %465, %v391
  %v467 = vpop.permute.xlu0 %466
  %468 = vset.pattern.permute.xlu0 0
  %469 = vperm.xlu0 %468, %v392
  %v470 = vpop.permute.xlu0 %469
  %471 = vset.pattern.permute.xlu0 0
  %472 = vperm.xlu0 %471, %v393
  %v473 = vpop.permute.xlu0 %472
  %474 = vset.pattern.permute.xlu0 0
  %475 = vperm.xlu0 %474, %v394
  %v476 = vpop.permute.xlu0 %475
  %477 = vset.pattern.permute.xlu0 0
  %478 = vperm.xlu0 %477, %v395
  %v479 = vpop.permute.xlu0 %478
  %480 = vset.pattern.permute.xlu0 0
  %481 = vperm.xlu0 %480, %v396
  %v482 = vpop.permute.xlu0 %481
  %483 = vset.pattern.permute.xlu0 0
  %484 = vperm.xlu0 %483, %v397
  %v485 = vpop.permute.xlu0 %484
  %486 = vset.pattern.permute.xlu0 0
  %487 = vperm.xlu0 %486, %v398
  %v488 = vpop.permute.xlu0 %487
  %489 = vset.pattern.permute.xlu0 0
  %490 = vperm.xlu0 %489, %v399
  %v491 = vpop.permute.xlu0 %490
  %492 = vset.pattern.permute.xlu0 0
  %493 = vperm.xlu0 %492, %v400
  %v494 = vpop.permute.xlu0 %493
  %495 = vset.pattern.permute.xlu0 0
  %496 = vperm.xlu0 %495, %v401
  %v497 = vpop.permute.xlu0 %496
  %498 = vset.pattern.permute.xlu0 0
  %499 = vperm.xlu0 %498, %v402
  %v500 = vpop.permute.xlu0 %499
  %501 = vset.pattern.permute.xlu0 0
  %502 = vperm.xlu0 %501, %v403
  %v503 = vpop.permute.xlu0 %502
  %504 = vset.pattern.permute.xlu0 0
  %505 = vperm.xlu0 %504, %v404
  %v506 = vpop.permute.xlu0 %505
  %507 = vset.pattern.permute.xlu0 0
  %508 = vperm.xlu0 %507, %v405
  %v509 = vpop.permute.xlu0 %508
  %510 = vset.pattern.permute.xlu0 0
  %511 = vperm.xlu0 %510, %v406
  %v512 = vpop.permute.xlu0 %511
  %513 = vset.pattern.permute.xlu0 0
  %514 = vperm.xlu0 %513, %v407
  %v515 = vpop.permute.xlu0 %514
  %516 = vset.pattern.permute.xlu0 0
  %517 = vperm.xlu0 %516, %v408
  %v518 = vpop.permute.xlu0 %517
  %519 = vset.pattern.permute.xlu0 0
  %520 = vperm.xlu0 %519, %v409
  %v521 = vpop.permute.xlu0 %520
  %522 = vset.pattern.permute.xlu0 0
  %523 = vperm.xlu0 %522, %v410
  %v524 = vpop.permute.xlu0 %523
  %vm525 = vcmp.eq.s32.totalorder %v413, 1
  %vm526 = vcmp.eq.s32.totalorder %v416, 1
  %vm527 = vcmp.eq.s32.totalorder %v419, 1
  %vm528 = vcmp.eq.s32.totalorder %v422, 1
  %vm529 = vcmp.eq.s32.totalorder %v425, 1
  %vm530 = vcmp.eq.s32.totalorder %v428, 1
  %vm531 = vcmp.eq.s32.totalorder %v431, 1
  %vm532 = vcmp.eq.s32.totalorder %v434, 1
  %vm533 = vcmp.eq.s32.totalorder %v437, 1
  %vm534 = vcmp.eq.s32.totalorder %v440, 1
  %vm535 = vcmp.eq.s32.totalorder %v443, 1
  %vm536 = vcmp.eq.s32.totalorder %v446, 1
  %vm537 = vcmp.eq.s32.totalorder %v449, 1
  %vm538 = vcmp.eq.s32.totalorder %v452, 1
  %vm539 = vcmp.eq.s32.totalorder %v455, 1
  %vm540 = vcmp.eq.s32.totalorder %v458, 1
  %vm541 = vcmp.eq.s32.totalorder %v461, 1
  %vm542 = vcmp.eq.s32.totalorder %v464, 1
  %vm543 = vcmp.eq.s32.totalorder %v467, 1
  %vm544 = vcmp.eq.s32.totalorder %v470, 1
  %vm545 = vcmp.eq.s32.totalorder %v473, 1
  %vm546 = vcmp.eq.s32.totalorder %v476, 1
  %vm547 = vcmp.eq.s32.totalorder %v479, 1
  %vm548 = vcmp.eq.s32.totalorder %v482, 1
  %vm549 = vcmp.eq.s32.totalorder %v485, 1
  %vm550 = vcmp.eq.s32.totalorder %v488, 1
  %vm551 = vcmp.eq.s32.totalorder %v491, 1
  %vm552 = vcmp.eq.s32.totalorder %v494, 1
  %vm553 = vcmp.eq.s32.totalorder %v497, 1
  %vm554 = vcmp.eq.s32.totalorder %v500, 1
  %vm555 = vcmp.eq.s32.totalorder %v503, 1
  %vm556 = vcmp.eq.s32.totalorder %v506, 1
  %vm557 = vcmp.eq.s32.totalorder %v509, 1
  %vm558 = vcmp.eq.s32.totalorder %v512, 1
  %vm559 = vcmp.eq.s32.totalorder %v515, 1
  %vm560 = vcmp.eq.s32.totalorder %v518, 1
  %vm561 = vcmp.eq.s32.totalorder %v521, 1
  %vm562 = vcmp.eq.s32.totalorder %v524, 1
  %v563 = vsel %vm525, %v86, -inf
  %v564 = vsel %vm526, %v87, -inf
  %v565 = vsel %vm527, %v88, -inf
  %v566 = vsel %vm528, %v89, -inf
  %v567 = vsel %vm529, %v90, -inf
  %v568 = vsel %vm530, %v91, -inf
  %v569 = vsel %vm531, %v92, -inf
  %v570 = vsel %vm532, %v93, -inf
  %v571 = vsel %vm533, %v94, -inf
  %v572 = vsel %vm534, %v95, -inf
  %v573 = vsel %vm535, %v96, -inf
  %v574 = vsel %vm536, %v97, -inf
  %v575 = vsel %vm537, %v98, -inf
  %v576 = vsel %vm538, %v99, -inf
  %v577 = vsel %vm539, %v100, -inf
  %v578 = vsel %vm540, %v101, -inf
  %v579 = vsel %vm541, %v102, -inf
  %v580 = vsel %vm542, %v103, -inf
  %v581 = vsel %vm543, %v104, -inf
  %v582 = vsel %vm544, %v105, -inf
  %v583 = vsel %vm545, %v106, -inf
  %v584 = vsel %vm546, %v107, -inf
  %v585 = vsel %vm547, %v108, -inf
  %v586 = vsel %vm548, %v109, -inf
  %v587 = vsel %vm549, %v110, -inf
  %v588 = vsel %vm550, %v111, -inf
  %v589 = vsel %vm551, %v112, -inf
  %v590 = vsel %vm552, %v113, -inf
  %v591 = vsel %vm553, %v114, -inf
  %v592 = vsel %vm554, %v115, -inf
  %v593 = vsel %vm555, %v116, -inf
  %v594 = vsel %vm556, %v117, -inf
  %v595 = vsel %vm557, %v118, -inf
  %v596 = vsel %vm558, %v119, -inf
  %v597 = vsel %vm559, %v120, -inf
  %v598 = vsel %vm560, %v121, -inf
  %v599 = vsel %vm561, %v122, -inf
  %v600 = vsel %vm562, %v123, -inf
  %v601 = vmax.f32 %v563, %v567
  %v602 = vmax.f32 %v564, %v568
  %v603 = vmax.f32 %v565, %v569
  %v604 = vmax.f32 %v566, %v570
  %v605 = vmax.f32 %v601, %v571
  %v606 = vmax.f32 %v602, %v572
  %v607 = vmax.f32 %v603, %v573
  %v608 = vmax.f32 %v604, %v574
  %v609 = vmax.f32 %v605, %v575
  %v610 = vmax.f32 %v606, %v576
  %v611 = vmax.f32 %v607, %v577
  %v612 = vmax.f32 %v608, %v578
  %v613 = vmax.f32 %v609, %v579
  %v614 = vmax.f32 %v610, %v580
  %v615 = vmax.f32 %v611, %v581
  %v616 = vmax.f32 %v612, %v582
  %v617 = vmax.f32 %v613, %v583
  %v618 = vmax.f32 %v614, %v584
  %v619 = vmax.f32 %v615, %v585
  %v620 = vmax.f32 %v616, %v586
  %v621 = vmax.f32 %v617, %v587
  %v622 = vmax.f32 %v618, %v588
  %v623 = vmax.f32 %v619, %v589
  %v624 = vmax.f32 %v620, %v590
  %v625 = vmax.f32 %v621, %v591
  %v626 = vmax.f32 %v622, %v592
  %v627 = vmax.f32 %v623, %v593
  %v628 = vmax.f32 %v624, %v594
  %v629 = vmax.f32 %v625, %v595
  %v630 = vmax.f32 %v626, %v596
  %v631 = vmax.f32 %v627, %v597
  %v632 = vmax.f32 %v628, %v598
  %v633 = vmax.f32 %v629, %v599
  %v634 = vmax.f32 %v630, %v600
  %v635 = vmax.f32 %v633, %v634
  %v636 = vmax.f32 %v631, %v632
  %v637 = vmax.f32 %v635, %v636
  %v638 = vrot.slane %v637, 4
  %v639 = vmax.f32 %v637, %v638
  %v640 = vrot.slane %v639, 2
  %v641 = vmax.f32 %v639, %v640
  %v642 = vrot.slane %v641, 1
  %v643 = vmax.f32 %v641, %v642
  %s644 = sadd.s32 %s85, 1
  %v645 = vstv %s644
  %vm646 = vcmp.eq.s32.totalorder %v125, %v645
  %vm647 = vcmp.eq.s32.totalorder %v126, %v645
  %vm648 = vcmp.eq.s32.totalorder %v127, %v645
  %vm649 = vcmp.eq.s32.totalorder %v128, %v645
  %vm650 = vcmp.eq.s32.totalorder %v129, %v645
  %vm651 = vcmp.eq.s32.totalorder %v130, %v645
  %vm652 = vcmp.eq.s32.totalorder %v131, %v645
  %vm653 = vcmp.eq.s32.totalorder %v132, %v645
  %vm654 = vcmp.eq.s32.totalorder %v133, %v645
  %vm655 = vcmp.eq.s32.totalorder %v134, %v645
  %vm656 = vcmp.eq.s32.totalorder %v135, %v645
  %vm657 = vcmp.eq.s32.totalorder %v136, %v645
  %vm658 = vcmp.eq.s32.totalorder %v137, %v645
  %vm659 = vcmp.eq.s32.totalorder %v138, %v645
  %vm660 = vcmp.eq.s32.totalorder %v139, %v645
  %vm661 = vcmp.eq.s32.totalorder %v140, %v645
  %vm662 = vcmp.eq.s32.totalorder %v141, %v645
  %vm663 = vcmp.eq.s32.totalorder %v142, %v645
  %vm664 = vcmp.eq.s32.totalorder %v143, %v645
  %vm665 = vcmp.eq.s32.totalorder %v144, %v645
  %vm666 = vcmp.eq.s32.totalorder %v145, %v645
  %vm667 = vcmp.eq.s32.totalorder %v146, %v645
  %vm668 = vcmp.eq.s32.totalorder %v147, %v645
  %vm669 = vcmp.eq.s32.totalorder %v148, %v645
  %vm670 = vcmp.eq.s32.totalorder %v149, %v645
  %vm671 = vcmp.eq.s32.totalorder %v150, %v645
  %vm672 = vcmp.eq.s32.totalorder %v151, %v645
  %vm673 = vcmp.eq.s32.totalorder %v152, %v645
  %vm674 = vcmp.eq.s32.totalorder %v153, %v645
  %vm675 = vcmp.eq.s32.totalorder %v154, %v645
  %vm676 = vcmp.eq.s32.totalorder %v155, %v645
  %vm677 = vcmp.eq.s32.totalorder %v156, %v645
  %vm678 = vcmp.eq.s32.totalorder %v157, %v645
  %vm679 = vcmp.eq.s32.totalorder %v158, %v645
  %vm680 = vcmp.eq.s32.totalorder %v159, %v645
  %vm681 = vcmp.eq.s32.totalorder %v160, %v645
  %vm682 = vcmp.eq.s32.totalorder %v161, %v645
  %vm683 = vcmp.eq.s32.totalorder %v162, %v645
  %v684 = vsel %vm646, 1, 0
  %v685 = vsel %vm647, 1, 0
  %v686 = vsel %vm648, 1, 0
  %v687 = vsel %vm649, 1, 0
  %v688 = vsel %vm650, 1, 0
  %v689 = vsel %vm651, 1, 0
  %v690 = vsel %vm652, 1, 0
  %v691 = vsel %vm653, 1, 0
  %v692 = vsel %vm654, 1, 0
  %v693 = vsel %vm655, 1, 0
  %v694 = vsel %vm656, 1, 0
  %v695 = vsel %vm657, 1, 0
  %v696 = vsel %vm658, 1, 0
  %v697 = vsel %vm659, 1, 0
  %v698 = vsel %vm660, 1, 0
  %v699 = vsel %vm661, 1, 0
  %v700 = vsel %vm662, 1, 0
  %v701 = vsel %vm663, 1, 0
  %v702 = vsel %vm664, 1, 0
  %v703 = vsel %vm665, 1, 0
  %v704 = vsel %vm666, 1, 0
  %v705 = vsel %vm667, 1, 0
  %v706 = vsel %vm668, 1, 0
  %v707 = vsel %vm669, 1, 0
  %v708 = vsel %vm670, 1, 0
  %v709 = vsel %vm671, 1, 0
  %v710 = vsel %vm672, 1, 0
  %v711 = vsel %vm673, 1, 0
  %v712 = vsel %vm674, 1, 0
  %v713 = vsel %vm675, 1, 0
  %v714 = vsel %vm676, 1, 0
  %v715 = vsel %vm677, 1, 0
  %v716 = vsel %vm678, 1, 0
  %v717 = vsel %vm679, 1, 0
  %v718 = vsel %vm680, 1, 0
  %v719 = vsel %vm681, 1, 0
  %v720 = vsel %vm682, 1, 0
  %v721 = vsel %vm683, 1, 0
  %722 = vset.pattern.permute.xlu0 0
  %723 = vperm.xlu0 %722, %v684
  %v724 = vpop.permute.xlu0 %723
  %725 = vset.pattern.permute.xlu0 0
  %726 = vperm.xlu0 %725, %v685
  %v727 = vpop.permute.xlu0 %726
  %728 = vset.pattern.permute.xlu0 0
  %729 = vperm.xlu0 %728, %v686
  %v730 = vpop.permute.xlu0 %729
  %731 = vset.pattern.permute.xlu0 0
  %732 = vperm.xlu0 %731, %v687
  %v733 = vpop.permute.xlu0 %732
  %734 = vset.pattern.permute.xlu0 0
  %735 = vperm.xlu0 %734, %v688
  %v736 = vpop.permute.xlu0 %735
  %737 = vset.pattern.permute.xlu0 0
  %738 = vperm.xlu0 %737, %v689
  %v739 = vpop.permute.xlu0 %738
  %740 = vset.pattern.permute.xlu0 0
  %741 = vperm.xlu0 %740, %v690
  %v742 = vpop.permute.xlu0 %741
  %743 = vset.pattern.permute.xlu0 0
  %744 = vperm.xlu0 %743, %v691
  %v745 = vpop.permute.xlu0 %744
  %746 = vset.pattern.permute.xlu0 0
  %747 = vperm.xlu0 %746, %v692
  %v748 = vpop.permute.xlu0 %747
  %749 = vset.pattern.permute.xlu0 0
  %750 = vperm.xlu0 %749, %v693
  %v751 = vpop.permute.xlu0 %750
  %752 = vset.pattern.permute.xlu0 0
  %753 = vperm.xlu0 %752, %v694
  %v754 = vpop.permute.xlu0 %753
  %755 = vset.pattern.permute.xlu0 0
  %756 = vperm.xlu0 %755, %v695
  %v757 = vpop.permute.xlu0 %756
  %758 = vset.pattern.permute.xlu0 0
  %759 = vperm.xlu0 %758, %v696
  %v760 = vpop.permute.xlu0 %759
  %761 = vset.pattern.permute.xlu0 0
  %762 = vperm.xlu0 %761, %v697
  %v763 = vpop.permute.xlu0 %762
  %764 = vset.pattern.permute.xlu0 0
  %765 = vperm.xlu0 %764, %v698
  %v766 = vpop.permute.xlu0 %765
  %767 = vset.pattern.permute.xlu0 0
  %768 = vperm.xlu0 %767, %v699
  %v769 = vpop.permute.xlu0 %768
  %770 = vset.pattern.permute.xlu0 0
  %771 = vperm.xlu0 %770, %v700
  %v772 = vpop.permute.xlu0 %771
  %773 = vset.pattern.permute.xlu0 0
  %774 = vperm.xlu0 %773, %v701
  %v775 = vpop.permute.xlu0 %774
  %776 = vset.pattern.permute.xlu0 0
  %777 = vperm.xlu0 %776, %v702
  %v778 = vpop.permute.xlu0 %777
  %779 = vset.pattern.permute.xlu0 0
  %780 = vperm.xlu0 %779, %v703
  %v781 = vpop.permute.xlu0 %780
  %782 = vset.pattern.permute.xlu0 0
  %783 = vperm.xlu0 %782, %v704
  %v784 = vpop.permute.xlu0 %783
  %785 = vset.pattern.permute.xlu0 0
  %786 = vperm.xlu0 %785, %v705
  %v787 = vpop.permute.xlu0 %786
  %788 = vset.pattern.permute.xlu0 0
  %789 = vperm.xlu0 %788, %v706
  %v790 = vpop.permute.xlu0 %789
  %791 = vset.pattern.permute.xlu0 0
  %792 = vperm.xlu0 %791, %v707
  %v793 = vpop.permute.xlu0 %792
  %794 = vset.pattern.permute.xlu0 0
  %795 = vperm.xlu0 %794, %v708
  %v796 = vpop.permute.xlu0 %795
  %797 = vset.pattern.permute.xlu0 0
  %798 = vperm.xlu0 %797, %v709
  %v799 = vpop.permute.xlu0 %798
  %800 = vset.pattern.permute.xlu0 0
  %801 = vperm.xlu0 %800, %v710
  %v802 = vpop.permute.xlu0 %801
  %803 = vset.pattern.permute.xlu0 0
  %804 = vperm.xlu0 %803, %v711
  %v805 = vpop.permute.xlu0 %804
  %806 = vset.pattern.permute.xlu0 0
  %807 = vperm.xlu0 %806, %v712
  %v808 = vpop.permute.xlu0 %807
  %809 = vset.pattern.permute.xlu0 0
  %810 = vperm.xlu0 %809, %v713
  %v811 = vpop.permute.xlu0 %810
  %812 = vset.pattern.permute.xlu0 0
  %813 = vperm.xlu0 %812, %v714
  %v814 = vpop.permute.xlu0 %813
  %815 = vset.pattern.permute.xlu0 0
  %816 = vperm.xlu0 %815, %v715
  %v817 = vpop.permute.xlu0 %816
  %818 = vset.pattern.permute.xlu0 0
  %819 = vperm.xlu0 %818, %v716
  %v820 = vpop.permute.xlu0 %819
  %821 = vset.pattern.permute.xlu0 0
  %822 = vperm.xlu0 %821, %v717
  %v823 = vpop.permute.xlu0 %822
  %824 = vset.pattern.permute.xlu0 0
  %825 = vperm.xlu0 %824, %v718
  %v826 = vpop.permute.xlu0 %825
  %827 = vset.pattern.permute.xlu0 0
  %828 = vperm.xlu0 %827, %v719
  %v829 = vpop.permute.xlu0 %828
  %830 = vset.pattern.permute.xlu0 0
  %831 = vperm.xlu0 %830, %v720
  %v832 = vpop.permute.xlu0 %831
  %833 = vset.pattern.permute.xlu0 0
  %834 = vperm.xlu0 %833, %v721
  %v835 = vpop.permute.xlu0 %834
  %vm836 = vcmp.eq.s32.totalorder %v724, 1
  %vm837 = vcmp.eq.s32.totalorder %v727, 1
  %vm838 = vcmp.eq.s32.totalorder %v730, 1
  %vm839 = vcmp.eq.s32.totalorder %v733, 1
  %vm840 = vcmp.eq.s32.totalorder %v736, 1
  %vm841 = vcmp.eq.s32.totalorder %v739, 1
  %vm842 = vcmp.eq.s32.totalorder %v742, 1
  %vm843 = vcmp.eq.s32.totalorder %v745, 1
  %vm844 = vcmp.eq.s32.totalorder %v748, 1
  %vm845 = vcmp.eq.s32.totalorder %v751, 1
  %vm846 = vcmp.eq.s32.totalorder %v754, 1
  %vm847 = vcmp.eq.s32.totalorder %v757, 1
  %vm848 = vcmp.eq.s32.totalorder %v760, 1
  %vm849 = vcmp.eq.s32.totalorder %v763, 1
  %vm850 = vcmp.eq.s32.totalorder %v766, 1
  %vm851 = vcmp.eq.s32.totalorder %v769, 1
  %vm852 = vcmp.eq.s32.totalorder %v772, 1
  %vm853 = vcmp.eq.s32.totalorder %v775, 1
  %vm854 = vcmp.eq.s32.totalorder %v778, 1
  %vm855 = vcmp.eq.s32.totalorder %v781, 1
  %vm856 = vcmp.eq.s32.totalorder %v784, 1
  %vm857 = vcmp.eq.s32.totalorder %v787, 1
  %vm858 = vcmp.eq.s32.totalorder %v790, 1
  %vm859 = vcmp.eq.s32.totalorder %v793, 1
  %vm860 = vcmp.eq.s32.totalorder %v796, 1
  %vm861 = vcmp.eq.s32.totalorder %v799, 1
  %vm862 = vcmp.eq.s32.totalorder %v802, 1
  %vm863 = vcmp.eq.s32.totalorder %v805, 1
  %vm864 = vcmp.eq.s32.totalorder %v808, 1
  %vm865 = vcmp.eq.s32.totalorder %v811, 1
  %vm866 = vcmp.eq.s32.totalorder %v814, 1
  %vm867 = vcmp.eq.s32.totalorder %v817, 1
  %vm868 = vcmp.eq.s32.totalorder %v820, 1
  %vm869 = vcmp.eq.s32.totalorder %v823, 1
  %vm870 = vcmp.eq.s32.totalorder %v826, 1
  %vm871 = vcmp.eq.s32.totalorder %v829, 1
  %vm872 = vcmp.eq.s32.totalorder %v832, 1
  %vm873 = vcmp.eq.s32.totalorder %v835, 1
  %v874 = vsel %vm836, %v86, -inf
  %v875 = vsel %vm837, %v87, -inf
  %v876 = vsel %vm838, %v88, -inf
  %v877 = vsel %vm839, %v89, -inf
  %v878 = vsel %vm840, %v90, -inf
  %v879 = vsel %vm841, %v91, -inf
  %v880 = vsel %vm842, %v92, -inf
  %v881 = vsel %vm843, %v93, -inf
  %v882 = vsel %vm844, %v94, -inf
  %v883 = vsel %vm845, %v95, -inf
  %v884 = vsel %vm846, %v96, -inf
  %v885 = vsel %vm847, %v97, -inf
  %v886 = vsel %vm848, %v98, -inf
  %v887 = vsel %vm849, %v99, -inf
  %v888 = vsel %vm850, %v100, -inf
  %v889 = vsel %vm851, %v101, -inf
  %v890 = vsel %vm852, %v102, -inf
  %v891 = vsel %vm853, %v103, -inf
  %v892 = vsel %vm854, %v104, -inf
  %v893 = vsel %vm855, %v105, -inf
  %v894 = vsel %vm856, %v106, -inf
  %v895 = vsel %vm857, %v107, -inf
  %v896 = vsel %vm858, %v108, -inf
  %v897 = vsel %vm859, %v109, -inf
  %v898 = vsel %vm860, %v110, -inf
  %v899 = vsel %vm861, %v111, -inf
  %v900 = vsel %vm862, %v112, -inf
  %v901 = vsel %vm863, %v113, -inf
  %v902 = vsel %vm864, %v114, -inf
  %v903 = vsel %vm865, %v115, -inf
  %v904 = vsel %vm866, %v116, -inf
  %v905 = vsel %vm867, %v117, -inf
  %v906 = vsel %vm868, %v118, -inf
  %v907 = vsel %vm869, %v119, -inf
  %v908 = vsel %vm870, %v120, -inf
  %v909 = vsel %vm871, %v121, -inf
  %v910 = vsel %vm872, %v122, -inf
  %v911 = vsel %vm873, %v123, -inf
  %v912 = vmax.f32 %v874, %v878
  %v913 = vmax.f32 %v875, %v879
  %v914 = vmax.f32 %v876, %v880
  %v915 = vmax.f32 %v877, %v881
  %v916 = vmax.f32 %v912, %v882
  %v917 = vmax.f32 %v913, %v883
  %v918 = vmax.f32 %v914, %v884
  %v919 = vmax.f32 %v915, %v885
  %v920 = vmax.f32 %v916, %v886
  %v921 = vmax.f32 %v917, %v887
  %v922 = vmax.f32 %v918, %v888
  %v923 = vmax.f32 %v919, %v889
  %v924 = vmax.f32 %v920, %v890
  %v925 = vmax.f32 %v921, %v891
  %v926 = vmax.f32 %v922, %v892
  %v927 = vmax.f32 %v923, %v893
  %v928 = vmax.f32 %v924, %v894
  %v929 = vmax.f32 %v925, %v895
  %v930 = vmax.f32 %v926, %v896
  %v931 = vmax.f32 %v927, %v897
  %v932 = vmax.f32 %v928, %v898
  %v933 = vmax.f32 %v929, %v899
  %v934 = vmax.f32 %v930, %v900
  %v935 = vmax.f32 %v931, %v901
  %v936 = vmax.f32 %v932, %v902
  %v937 = vmax.f32 %v933, %v903
  %v938 = vmax.f32 %v934, %v904
  %v939 = vmax.f32 %v935, %v905
  %v940 = vmax.f32 %v936, %v906
  %v941 = vmax.f32 %v937, %v907
  %v942 = vmax.f32 %v938, %v908
  %v943 = vmax.f32 %v939, %v909
  %v944 = vmax.f32 %v940, %v910
  %v945 = vmax.f32 %v941, %v911
  %v946 = vmax.f32 %v944, %v945
  %v947 = vmax.f32 %v942, %v943
  %v948 = vmax.f32 %v946, %v947
  %v949 = vrot.slane %v948, 4
  %v950 = vmax.f32 %v948, %v949
  %v951 = vrot.slane %v950, 2
  %v952 = vmax.f32 %v950, %v951
  %v953 = vrot.slane %v952, 1
  %v954 = vmax.f32 %v952, %v953
  %s955 = sadd.s32 %s85, 2
  %v956 = vstv %s955
  %vm957 = vcmp.eq.s32.totalorder %v125, %v956
  %vm958 = vcmp.eq.s32.totalorder %v126, %v956
  %vm959 = vcmp.eq.s32.totalorder %v127, %v956
  %vm960 = vcmp.eq.s32.totalorder %v128, %v956
  %vm961 = vcmp.eq.s32.totalorder %v129, %v956
  %vm962 = vcmp.eq.s32.totalorder %v130, %v956
  %vm963 = vcmp.eq.s32.totalorder %v131, %v956
  %vm964 = vcmp.eq.s32.totalorder %v132, %v956
  %vm965 = vcmp.eq.s32.totalorder %v133, %v956
  %vm966 = vcmp.eq.s32.totalorder %v134, %v956
  %vm967 = vcmp.eq.s32.totalorder %v135, %v956
  %vm968 = vcmp.eq.s32.totalorder %v136, %v956
  %vm969 = vcmp.eq.s32.totalorder %v137, %v956
  %vm970 = vcmp.eq.s32.totalorder %v138, %v956
  %vm971 = vcmp.eq.s32.totalorder %v139, %v956
  %vm972 = vcmp.eq.s32.totalorder %v140, %v956
  %vm973 = vcmp.eq.s32.totalorder %v141, %v956
  %vm974 = vcmp.eq.s32.totalorder %v142, %v956
  %vm975 = vcmp.eq.s32.totalorder %v143, %v956
  %vm976 = vcmp.eq.s32.totalorder %v144, %v956
  %vm977 = vcmp.eq.s32.totalorder %v145, %v956
  %vm978 = vcmp.eq.s32.totalorder %v146, %v956
  %vm979 = vcmp.eq.s32.totalorder %v147, %v956
  %vm980 = vcmp.eq.s32.totalorder %v148, %v956
  %vm981 = vcmp.eq.s32.totalorder %v149, %v956
  %vm982 = vcmp.eq.s32.totalorder %v150, %v956
  %vm983 = vcmp.eq.s32.totalorder %v151, %v956
  %vm984 = vcmp.eq.s32.totalorder %v152, %v956
  %vm985 = vcmp.eq.s32.totalorder %v153, %v956
  %vm986 = vcmp.eq.s32.totalorder %v154, %v956
  %vm987 = vcmp.eq.s32.totalorder %v155, %v956
  %vm988 = vcmp.eq.s32.totalorder %v156, %v956
  %vm989 = vcmp.eq.s32.totalorder %v157, %v956
  %vm990 = vcmp.eq.s32.totalorder %v158, %v956
  %vm991 = vcmp.eq.s32.totalorder %v159, %v956
  %vm992 = vcmp.eq.s32.totalorder %v160, %v956
  %vm993 = vcmp.eq.s32.totalorder %v161, %v956
  %vm994 = vcmp.eq.s32.totalorder %v162, %v956
  %v995 = vsel %vm957, 1, 0
  %v996 = vsel %vm958, 1, 0
  %v997 = vsel %vm959, 1, 0
  %v998 = vsel %vm960, 1, 0
  %v999 = vsel %vm961, 1, 0
  %v1000 = vsel %vm962, 1, 0
  %v1001 = vsel %vm963, 1, 0
  %v1002 = vsel %vm964, 1, 0
  %v1003 = vsel %vm965, 1, 0
  %v1004 = vsel %vm966, 1, 0
  %v1005 = vsel %vm967, 1, 0
  %v1006 = vsel %vm968, 1, 0
  %v1007 = vsel %vm969, 1, 0
  %v1008 = vsel %vm970, 1, 0
  %v1009 = vsel %vm971, 1, 0
  %v1010 = vsel %vm972, 1, 0
  %v1011 = vsel %vm973, 1, 0
  %v1012 = vsel %vm974, 1, 0
  %v1013 = vsel %vm975, 1, 0
  %v1014 = vsel %vm976, 1, 0
  %v1015 = vsel %vm977, 1, 0
  %v1016 = vsel %vm978, 1, 0
  %v1017 = vsel %vm979, 1, 0
  %v1018 = vsel %vm980, 1, 0
  %v1019 = vsel %vm981, 1, 0
  %v1020 = vsel %vm982, 1, 0
  %v1021 = vsel %vm983, 1, 0
  %v1022 = vsel %vm984, 1, 0
  %v1023 = vsel %vm985, 1, 0
  %v1024 = vsel %vm986, 1, 0
  %v1025 = vsel %vm987, 1, 0
  %v1026 = vsel %vm988, 1, 0
  %v1027 = vsel %vm989, 1, 0
  %v1028 = vsel %vm990, 1, 0
  %v1029 = vsel %vm991, 1, 0
  %v1030 = vsel %vm992, 1, 0
  %v1031 = vsel %vm993, 1, 0
  %v1032 = vsel %vm994, 1, 0
  %1033 = vset.pattern.permute.xlu0 0
  %1034 = vperm.xlu0 %1033, %v995
  %v1035 = vpop.permute.xlu0 %1034
  %1036 = vset.pattern.permute.xlu0 0
  %1037 = vperm.xlu0 %1036, %v996
  %v1038 = vpop.permute.xlu0 %1037
  %1039 = vset.pattern.permute.xlu0 0
  %1040 = vperm.xlu0 %1039, %v997
  %v1041 = vpop.permute.xlu0 %1040
  %1042 = vset.pattern.permute.xlu0 0
  %1043 = vperm.xlu0 %1042, %v998
  %v1044 = vpop.permute.xlu0 %1043
  %1045 = vset.pattern.permute.xlu0 0
  %1046 = vperm.xlu0 %1045, %v999
  %v1047 = vpop.permute.xlu0 %1046
  %1048 = vset.pattern.permute.xlu0 0
  %1049 = vperm.xlu0 %1048, %v1000
  %v1050 = vpop.permute.xlu0 %1049
  %1051 = vset.pattern.permute.xlu0 0
  %1052 = vperm.xlu0 %1051, %v1001
  %v1053 = vpop.permute.xlu0 %1052
  %1054 = vset.pattern.permute.xlu0 0
  %1055 = vperm.xlu0 %1054, %v1002
  %v1056 = vpop.permute.xlu0 %1055
  %1057 = vset.pattern.permute.xlu0 0
  %1058 = vperm.xlu0 %1057, %v1003
  %v1059 = vpop.permute.xlu0 %1058
  %1060 = vset.pattern.permute.xlu0 0
  %1061 = vperm.xlu0 %1060, %v1004
  %v1062 = vpop.permute.xlu0 %1061
  %1063 = vset.pattern.permute.xlu0 0
  %1064 = vperm.xlu0 %1063, %v1005
  %v1065 = vpop.permute.xlu0 %1064
  %1066 = vset.pattern.permute.xlu0 0
  %1067 = vperm.xlu0 %1066, %v1006
  %v1068 = vpop.permute.xlu0 %1067
  %1069 = vset.pattern.permute.xlu0 0
  %1070 = vperm.xlu0 %1069, %v1007
  %v1071 = vpop.permute.xlu0 %1070
  %1072 = vset.pattern.permute.xlu0 0
  %1073 = vperm.xlu0 %1072, %v1008
  %v1074 = vpop.permute.xlu0 %1073
  %1075 = vset.pattern.permute.xlu0 0
  %1076 = vperm.xlu0 %1075, %v1009
  %v1077 = vpop.permute.xlu0 %1076
  %1078 = vset.pattern.permute.xlu0 0
  %1079 = vperm.xlu0 %1078, %v1010
  %v1080 = vpop.permute.xlu0 %1079
  %1081 = vset.pattern.permute.xlu0 0
  %1082 = vperm.xlu0 %1081, %v1011
  %v1083 = vpop.permute.xlu0 %1082
  %1084 = vset.pattern.permute.xlu0 0
  %1085 = vperm.xlu0 %1084, %v1012
  %v1086 = vpop.permute.xlu0 %1085
  %1087 = vset.pattern.permute.xlu0 0
  %1088 = vperm.xlu0 %1087, %v1013
  %v1089 = vpop.permute.xlu0 %1088
  %1090 = vset.pattern.permute.xlu0 0
  %1091 = vperm.xlu0 %1090, %v1014
  %v1092 = vpop.permute.xlu0 %1091
  %1093 = vset.pattern.permute.xlu0 0
  %1094 = vperm.xlu0 %1093, %v1015
  %v1095 = vpop.permute.xlu0 %1094
  %1096 = vset.pattern.permute.xlu0 0
  %1097 = vperm.xlu0 %1096, %v1016
  %v1098 = vpop.permute.xlu0 %1097
  %1099 = vset.pattern.permute.xlu0 0
  %1100 = vperm.xlu0 %1099, %v1017
  %v1101 = vpop.permute.xlu0 %1100
  %1102 = vset.pattern.permute.xlu0 0
  %1103 = vperm.xlu0 %1102, %v1018
  %v1104 = vpop.permute.xlu0 %1103
  %1105 = vset.pattern.permute.xlu0 0
  %1106 = vperm.xlu0 %1105, %v1019
  %v1107 = vpop.permute.xlu0 %1106
  %1108 = vset.pattern.permute.xlu0 0
  %1109 = vperm.xlu0 %1108, %v1020
  %v1110 = vpop.permute.xlu0 %1109
  %1111 = vset.pattern.permute.xlu0 0
  %1112 = vperm.xlu0 %1111, %v1021
  %v1113 = vpop.permute.xlu0 %1112
  %1114 = vset.pattern.permute.xlu0 0
  %1115 = vperm.xlu0 %1114, %v1022
  %v1116 = vpop.permute.xlu0 %1115
  %1117 = vset.pattern.permute.xlu0 0
  %1118 = vperm.xlu0 %1117, %v1023
  %v1119 = vpop.permute.xlu0 %1118
  %1120 = vset.pattern.permute.xlu0 0
  %1121 = vperm.xlu0 %1120, %v1024
  %v1122 = vpop.permute.xlu0 %1121
  %1123 = vset.pattern.permute.xlu0 0
  %1124 = vperm.xlu0 %1123, %v1025
  %v1125 = vpop.permute.xlu0 %1124
  %1126 = vset.pattern.permute.xlu0 0
  %1127 = vperm.xlu0 %1126, %v1026
  %v1128 = vpop.permute.xlu0 %1127
  %1129 = vset.pattern.permute.xlu0 0
  %1130 = vperm.xlu0 %1129, %v1027
  %v1131 = vpop.permute.xlu0 %1130
  %1132 = vset.pattern.permute.xlu0 0
  %1133 = vperm.xlu0 %1132, %v1028
  %v1134 = vpop.permute.xlu0 %1133
  %1135 = vset.pattern.permute.xlu0 0
  %1136 = vperm.xlu0 %1135, %v1029
  %v1137 = vpop.permute.xlu0 %1136
  %1138 = vset.pattern.permute.xlu0 0
  %1139 = vperm.xlu0 %1138, %v1030
  %v1140 = vpop.permute.xlu0 %1139
  %1141 = vset.pattern.permute.xlu0 0
  %1142 = vperm.xlu0 %1141, %v1031
  %v1143 = vpop.permute.xlu0 %1142
  %1144 = vset.pattern.permute.xlu0 0
  %1145 = vperm.xlu0 %1144, %v1032
  %v1146 = vpop.permute.xlu0 %1145
  %vm1147 = vcmp.eq.s32.totalorder %v1035, 1
  %vm1148 = vcmp.eq.s32.totalorder %v1038, 1
  %vm1149 = vcmp.eq.s32.totalorder %v1041, 1
  %vm1150 = vcmp.eq.s32.totalorder %v1044, 1
  %vm1151 = vcmp.eq.s32.totalorder %v1047, 1
  %vm1152 = vcmp.eq.s32.totalorder %v1050, 1
  %vm1153 = vcmp.eq.s32.totalorder %v1053, 1
  %vm1154 = vcmp.eq.s32.totalorder %v1056, 1
  %vm1155 = vcmp.eq.s32.totalorder %v1059, 1
  %vm1156 = vcmp.eq.s32.totalorder %v1062, 1
  %vm1157 = vcmp.eq.s32.totalorder %v1065, 1
  %vm1158 = vcmp.eq.s32.totalorder %v1068, 1
  %vm1159 = vcmp.eq.s32.totalorder %v1071, 1
  %vm1160 = vcmp.eq.s32.totalorder %v1074, 1
  %vm1161 = vcmp.eq.s32.totalorder %v1077, 1
  %vm1162 = vcmp.eq.s32.totalorder %v1080, 1
  %vm1163 = vcmp.eq.s32.totalorder %v1083, 1
  %vm1164 = vcmp.eq.s32.totalorder %v1086, 1
  %vm1165 = vcmp.eq.s32.totalorder %v1089, 1
  %vm1166 = vcmp.eq.s32.totalorder %v1092, 1
  %vm1167 = vcmp.eq.s32.totalorder %v1095, 1
  %vm1168 = vcmp.eq.s32.totalorder %v1098, 1
  %vm1169 = vcmp.eq.s32.totalorder %v1101, 1
  %vm1170 = vcmp.eq.s32.totalorder %v1104, 1
  %vm1171 = vcmp.eq.s32.totalorder %v1107, 1
  %vm1172 = vcmp.eq.s32.totalorder %v1110, 1
  %vm1173 = vcmp.eq.s32.totalorder %v1113, 1
  %vm1174 = vcmp.eq.s32.totalorder %v1116, 1
  %vm1175 = vcmp.eq.s32.totalorder %v1119, 1
  %vm1176 = vcmp.eq.s32.totalorder %v1122, 1
  %vm1177 = vcmp.eq.s32.totalorder %v1125, 1
  %vm1178 = vcmp.eq.s32.totalorder %v1128, 1
  %vm1179 = vcmp.eq.s32.totalorder %v1131, 1
  %vm1180 = vcmp.eq.s32.totalorder %v1134, 1
  %vm1181 = vcmp.eq.s32.totalorder %v1137, 1
  %vm1182 = vcmp.eq.s32.totalorder %v1140, 1
  %vm1183 = vcmp.eq.s32.totalorder %v1143, 1
  %vm1184 = vcmp.eq.s32.totalorder %v1146, 1
  %v1185 = vsel %vm1147, %v86, -inf
  %v1186 = vsel %vm1148, %v87, -inf
  %v1187 = vsel %vm1149, %v88, -inf
  %v1188 = vsel %vm1150, %v89, -inf
  %v1189 = vsel %vm1151, %v90, -inf
  %v1190 = vsel %vm1152, %v91, -inf
  %v1191 = vsel %vm1153, %v92, -inf
  %v1192 = vsel %vm1154, %v93, -inf
  %v1193 = vsel %vm1155, %v94, -inf
  %v1194 = vsel %vm1156, %v95, -inf
  %v1195 = vsel %vm1157, %v96, -inf
  %v1196 = vsel %vm1158, %v97, -inf
  %v1197 = vsel %vm1159, %v98, -inf
  %v1198 = vsel %vm1160, %v99, -inf
  %v1199 = vsel %vm1161, %v100, -inf
  %v1200 = vsel %vm1162, %v101, -inf
  %v1201 = vsel %vm1163, %v102, -inf
  %v1202 = vsel %vm1164, %v103, -inf
  %v1203 = vsel %vm1165, %v104, -inf
  %v1204 = vsel %vm1166, %v105, -inf
  %v1205 = vsel %vm1167, %v106, -inf
  %v1206 = vsel %vm1168, %v107, -inf
  %v1207 = vsel %vm1169, %v108, -inf
  %v1208 = vsel %vm1170, %v109, -inf
  %v1209 = vsel %vm1171, %v110, -inf
  %v1210 = vsel %vm1172, %v111, -inf
  %v1211 = vsel %vm1173, %v112, -inf
  %v1212 = vsel %vm1174, %v113, -inf
  %v1213 = vsel %vm1175, %v114, -inf
  %v1214 = vsel %vm1176, %v115, -inf
  %v1215 = vsel %vm1177, %v116, -inf
  %v1216 = vsel %vm1178, %v117, -inf
  %v1217 = vsel %vm1179, %v118, -inf
  %v1218 = vsel %vm1180, %v119, -inf
  %v1219 = vsel %vm1181, %v120, -inf
  %v1220 = vsel %vm1182, %v121, -inf
  %v1221 = vsel %vm1183, %v122, -inf
  %v1222 = vsel %vm1184, %v123, -inf
  %v1223 = vmax.f32 %v1185, %v1189
  %v1224 = vmax.f32 %v1186, %v1190
  %v1225 = vmax.f32 %v1187, %v1191
  %v1226 = vmax.f32 %v1188, %v1192
  %v1227 = vmax.f32 %v1223, %v1193
  %v1228 = vmax.f32 %v1224, %v1194
  %v1229 = vmax.f32 %v1225, %v1195
  %v1230 = vmax.f32 %v1226, %v1196
  %v1231 = vmax.f32 %v1227, %v1197
  %v1232 = vmax.f32 %v1228, %v1198
  %v1233 = vmax.f32 %v1229, %v1199
  %v1234 = vmax.f32 %v1230, %v1200
  %v1235 = vmax.f32 %v1231, %v1201
  %v1236 = vmax.f32 %v1232, %v1202
  %v1237 = vmax.f32 %v1233, %v1203
  %v1238 = vmax.f32 %v1234, %v1204
  %v1239 = vmax.f32 %v1235, %v1205
  %v1240 = vmax.f32 %v1236, %v1206
  %v1241 = vmax.f32 %v1237, %v1207
  %v1242 = vmax.f32 %v1238, %v1208
  %v1243 = vmax.f32 %v1239, %v1209
  %v1244 = vmax.f32 %v1240, %v1210
  %v1245 = vmax.f32 %v1241, %v1211
  %v1246 = vmax.f32 %v1242, %v1212
  %v1247 = vmax.f32 %v1243, %v1213
  %v1248 = vmax.f32 %v1244, %v1214
  %v1249 = vmax.f32 %v1245, %v1215
  %v1250 = vmax.f32 %v1246, %v1216
  %v1251 = vmax.f32 %v1247, %v1217
  %v1252 = vmax.f32 %v1248, %v1218
  %v1253 = vmax.f32 %v1249, %v1219
  %v1254 = vmax.f32 %v1250, %v1220
  %v1255 = vmax.f32 %v1251, %v1221
  %v1256 = vmax.f32 %v1252, %v1222
  %v1257 = vmax.f32 %v1255, %v1256
  %v1258 = vmax.f32 %v1253, %v1254
  %v1259 = vmax.f32 %v1257, %v1258
  %v1260 = vrot.slane %v1259, 4
  %v1261 = vmax.f32 %v1259, %v1260
  %v1262 = vrot.slane %v1261, 2
  %v1263 = vmax.f32 %v1261, %v1262
  %v1264 = vrot.slane %v1263, 1
  %v1265 = vmax.f32 %v1263, %v1264
  %s1266 = sadd.s32 %s85, 3
  %v1267 = vstv %s1266
  %vm1268 = vcmp.eq.s32.totalorder %v125, %v1267
  %vm1269 = vcmp.eq.s32.totalorder %v126, %v1267
  %vm1270 = vcmp.eq.s32.totalorder %v127, %v1267
  %vm1271 = vcmp.eq.s32.totalorder %v128, %v1267
  %vm1272 = vcmp.eq.s32.totalorder %v129, %v1267
  %vm1273 = vcmp.eq.s32.totalorder %v130, %v1267
  %vm1274 = vcmp.eq.s32.totalorder %v131, %v1267
  %vm1275 = vcmp.eq.s32.totalorder %v132, %v1267
  %vm1276 = vcmp.eq.s32.totalorder %v133, %v1267
  %vm1277 = vcmp.eq.s32.totalorder %v134, %v1267
  %vm1278 = vcmp.eq.s32.totalorder %v135, %v1267
  %vm1279 = vcmp.eq.s32.totalorder %v136, %v1267
  %vm1280 = vcmp.eq.s32.totalorder %v137, %v1267
  %vm1281 = vcmp.eq.s32.totalorder %v138, %v1267
  %vm1282 = vcmp.eq.s32.totalorder %v139, %v1267
  %vm1283 = vcmp.eq.s32.totalorder %v140, %v1267
  %vm1284 = vcmp.eq.s32.totalorder %v141, %v1267
  %vm1285 = vcmp.eq.s32.totalorder %v142, %v1267
  %vm1286 = vcmp.eq.s32.totalorder %v143, %v1267
  %vm1287 = vcmp.eq.s32.totalorder %v144, %v1267
  %vm1288 = vcmp.eq.s32.totalorder %v145, %v1267
  %vm1289 = vcmp.eq.s32.totalorder %v146, %v1267
  %vm1290 = vcmp.eq.s32.totalorder %v147, %v1267
  %vm1291 = vcmp.eq.s32.totalorder %v148, %v1267
  %vm1292 = vcmp.eq.s32.totalorder %v149, %v1267
  %vm1293 = vcmp.eq.s32.totalorder %v150, %v1267
  %vm1294 = vcmp.eq.s32.totalorder %v151, %v1267
  %vm1295 = vcmp.eq.s32.totalorder %v152, %v1267
  %vm1296 = vcmp.eq.s32.totalorder %v153, %v1267
  %vm1297 = vcmp.eq.s32.totalorder %v154, %v1267
  %vm1298 = vcmp.eq.s32.totalorder %v155, %v1267
  %vm1299 = vcmp.eq.s32.totalorder %v156, %v1267
  %vm1300 = vcmp.eq.s32.totalorder %v157, %v1267
  %vm1301 = vcmp.eq.s32.totalorder %v158, %v1267
  %vm1302 = vcmp.eq.s32.totalorder %v159, %v1267
  %vm1303 = vcmp.eq.s32.totalorder %v160, %v1267
  %vm1304 = vcmp.eq.s32.totalorder %v161, %v1267
  %vm1305 = vcmp.eq.s32.totalorder %v162, %v1267
  %v1306 = vsel %vm1268, 1, 0
  %v1307 = vsel %vm1269, 1, 0
  %v1308 = vsel %vm1270, 1, 0
  %v1309 = vsel %vm1271, 1, 0
  %v1310 = vsel %vm1272, 1, 0
  %v1311 = vsel %vm1273, 1, 0
  %v1312 = vsel %vm1274, 1, 0
  %v1313 = vsel %vm1275, 1, 0
  %v1314 = vsel %vm1276, 1, 0
  %v1315 = vsel %vm1277, 1, 0
  %v1316 = vsel %vm1278, 1, 0
  %v1317 = vsel %vm1279, 1, 0
  %v1318 = vsel %vm1280, 1, 0
  %v1319 = vsel %vm1281, 1, 0
  %v1320 = vsel %vm1282, 1, 0
  %v1321 = vsel %vm1283, 1, 0
  %v1322 = vsel %vm1284, 1, 0
  %v1323 = vsel %vm1285, 1, 0
  %v1324 = vsel %vm1286, 1, 0
  %v1325 = vsel %vm1287, 1, 0
  %v1326 = vsel %vm1288, 1, 0
  %v1327 = vsel %vm1289, 1, 0
  %v1328 = vsel %vm1290, 1, 0
  %v1329 = vsel %vm1291, 1, 0
  %v1330 = vsel %vm1292, 1, 0
  %v1331 = vsel %vm1293, 1, 0
  %v1332 = vsel %vm1294, 1, 0
  %v1333 = vsel %vm1295, 1, 0
  %v1334 = vsel %vm1296, 1, 0
  %v1335 = vsel %vm1297, 1, 0
  %v1336 = vsel %vm1298, 1, 0
  %v1337 = vsel %vm1299, 1, 0
  %v1338 = vsel %vm1300, 1, 0
  %v1339 = vsel %vm1301, 1, 0
  %v1340 = vsel %vm1302, 1, 0
  %v1341 = vsel %vm1303, 1, 0
  %v1342 = vsel %vm1304, 1, 0
  %v1343 = vsel %vm1305, 1, 0
  %1344 = vset.pattern.permute.xlu0 0
  %1345 = vperm.xlu0 %1344, %v1306
  %v1346 = vpop.permute.xlu0 %1345
  %1347 = vset.pattern.permute.xlu0 0
  %1348 = vperm.xlu0 %1347, %v1307
  %v1349 = vpop.permute.xlu0 %1348
  %1350 = vset.pattern.permute.xlu0 0
  %1351 = vperm.xlu0 %1350, %v1308
  %v1352 = vpop.permute.xlu0 %1351
  %1353 = vset.pattern.permute.xlu0 0
  %1354 = vperm.xlu0 %1353, %v1309
  %v1355 = vpop.permute.xlu0 %1354
  %1356 = vset.pattern.permute.xlu0 0
  %1357 = vperm.xlu0 %1356, %v1310
  %v1358 = vpop.permute.xlu0 %1357
  %1359 = vset.pattern.permute.xlu0 0
  %1360 = vperm.xlu0 %1359, %v1311
  %v1361 = vpop.permute.xlu0 %1360
  %1362 = vset.pattern.permute.xlu0 0
  %1363 = vperm.xlu0 %1362, %v1312
  %v1364 = vpop.permute.xlu0 %1363
  %1365 = vset.pattern.permute.xlu0 0
  %1366 = vperm.xlu0 %1365, %v1313
  %v1367 = vpop.permute.xlu0 %1366
  %1368 = vset.pattern.permute.xlu0 0
  %1369 = vperm.xlu0 %1368, %v1314
  %v1370 = vpop.permute.xlu0 %1369
  %1371 = vset.pattern.permute.xlu0 0
  %1372 = vperm.xlu0 %1371, %v1315
  %v1373 = vpop.permute.xlu0 %1372
  %1374 = vset.pattern.permute.xlu0 0
  %1375 = vperm.xlu0 %1374, %v1316
  %v1376 = vpop.permute.xlu0 %1375
  %1377 = vset.pattern.permute.xlu0 0
  %1378 = vperm.xlu0 %1377, %v1317
  %v1379 = vpop.permute.xlu0 %1378
  %1380 = vset.pattern.permute.xlu0 0
  %1381 = vperm.xlu0 %1380, %v1318
  %v1382 = vpop.permute.xlu0 %1381
  %1383 = vset.pattern.permute.xlu0 0
  %1384 = vperm.xlu0 %1383, %v1319
  %v1385 = vpop.permute.xlu0 %1384
  %1386 = vset.pattern.permute.xlu0 0
  %1387 = vperm.xlu0 %1386, %v1320
  %v1388 = vpop.permute.xlu0 %1387
  %1389 = vset.pattern.permute.xlu0 0
  %1390 = vperm.xlu0 %1389, %v1321
  %v1391 = vpop.permute.xlu0 %1390
  %1392 = vset.pattern.permute.xlu0 0
  %1393 = vperm.xlu0 %1392, %v1322
  %v1394 = vpop.permute.xlu0 %1393
  %1395 = vset.pattern.permute.xlu0 0
  %1396 = vperm.xlu0 %1395, %v1323
  %v1397 = vpop.permute.xlu0 %1396
  %1398 = vset.pattern.permute.xlu0 0
  %1399 = vperm.xlu0 %1398, %v1324
  %v1400 = vpop.permute.xlu0 %1399
  %1401 = vset.pattern.permute.xlu0 0
  %1402 = vperm.xlu0 %1401, %v1325
  %v1403 = vpop.permute.xlu0 %1402
  %1404 = vset.pattern.permute.xlu0 0
  %1405 = vperm.xlu0 %1404, %v1326
  %v1406 = vpop.permute.xlu0 %1405
  %1407 = vset.pattern.permute.xlu0 0
  %1408 = vperm.xlu0 %1407, %v1327
  %v1409 = vpop.permute.xlu0 %1408
  %1410 = vset.pattern.permute.xlu0 0
  %1411 = vperm.xlu0 %1410, %v1328
  %v1412 = vpop.permute.xlu0 %1411
  %1413 = vset.pattern.permute.xlu0 0
  %1414 = vperm.xlu0 %1413, %v1329
  %v1415 = vpop.permute.xlu0 %1414
  %1416 = vset.pattern.permute.xlu0 0
  %1417 = vperm.xlu0 %1416, %v1330
  %v1418 = vpop.permute.xlu0 %1417
  %1419 = vset.pattern.permute.xlu0 0
  %1420 = vperm.xlu0 %1419, %v1331
  %v1421 = vpop.permute.xlu0 %1420
  %1422 = vset.pattern.permute.xlu0 0
  %1423 = vperm.xlu0 %1422, %v1332
  %v1424 = vpop.permute.xlu0 %1423
  %1425 = vset.pattern.permute.xlu0 0
  %1426 = vperm.xlu0 %1425, %v1333
  %v1427 = vpop.permute.xlu0 %1426
  %1428 = vset.pattern.permute.xlu0 0
  %1429 = vperm.xlu0 %1428, %v1334
  %v1430 = vpop.permute.xlu0 %1429
  %1431 = vset.pattern.permute.xlu0 0
  %1432 = vperm.xlu0 %1431, %v1335
  %v1433 = vpop.permute.xlu0 %1432
  %1434 = vset.pattern.permute.xlu0 0
  %1435 = vperm.xlu0 %1434, %v1336
  %v1436 = vpop.permute.xlu0 %1435
  %1437 = vset.pattern.permute.xlu0 0
  %1438 = vperm.xlu0 %1437, %v1337
  %v1439 = vpop.permute.xlu0 %1438
  %1440 = vset.pattern.permute.xlu0 0
  %1441 = vperm.xlu0 %1440, %v1338
  %v1442 = vpop.permute.xlu0 %1441
  %1443 = vset.pattern.permute.xlu0 0
  %1444 = vperm.xlu0 %1443, %v1339
  %v1445 = vpop.permute.xlu0 %1444
  %1446 = vset.pattern.permute.xlu0 0
  %1447 = vperm.xlu0 %1446, %v1340
  %v1448 = vpop.permute.xlu0 %1447
  %1449 = vset.pattern.permute.xlu0 0
  %1450 = vperm.xlu0 %1449, %v1341
  %v1451 = vpop.permute.xlu0 %1450
  %1452 = vset.pattern.permute.xlu0 0
  %1453 = vperm.xlu0 %1452, %v1342
  %v1454 = vpop.permute.xlu0 %1453
  %1455 = vset.pattern.permute.xlu0 0
  %1456 = vperm.xlu0 %1455, %v1343
  %v1457 = vpop.permute.xlu0 %1456
  %vm1458 = vcmp.eq.s32.totalorder %v1346, 1
  %vm1459 = vcmp.eq.s32.totalorder %v1349, 1
  %vm1460 = vcmp.eq.s32.totalorder %v1352, 1
  %vm1461 = vcmp.eq.s32.totalorder %v1355, 1
  %vm1462 = vcmp.eq.s32.totalorder %v1358, 1
  %vm1463 = vcmp.eq.s32.totalorder %v1361, 1
  %vm1464 = vcmp.eq.s32.totalorder %v1364, 1
  %vm1465 = vcmp.eq.s32.totalorder %v1367, 1
  %vm1466 = vcmp.eq.s32.totalorder %v1370, 1
  %vm1467 = vcmp.eq.s32.totalorder %v1373, 1
  %vm1468 = vcmp.eq.s32.totalorder %v1376, 1
  %vm1469 = vcmp.eq.s32.totalorder %v1379, 1
  %vm1470 = vcmp.eq.s32.totalorder %v1382, 1
  %vm1471 = vcmp.eq.s32.totalorder %v1385, 1
  %vm1472 = vcmp.eq.s32.totalorder %v1388, 1
  %vm1473 = vcmp.eq.s32.totalorder %v1391, 1
  %vm1474 = vcmp.eq.s32.totalorder %v1394, 1
  %vm1475 = vcmp.eq.s32.totalorder %v1397, 1
  %vm1476 = vcmp.eq.s32.totalorder %v1400, 1
  %vm1477 = vcmp.eq.s32.totalorder %v1403, 1
  %vm1478 = vcmp.eq.s32.totalorder %v1406, 1
  %vm1479 = vcmp.eq.s32.totalorder %v1409, 1
  %vm1480 = vcmp.eq.s32.totalorder %v1412, 1
  %vm1481 = vcmp.eq.s32.totalorder %v1415, 1
  %vm1482 = vcmp.eq.s32.totalorder %v1418, 1
  %vm1483 = vcmp.eq.s32.totalorder %v1421, 1
  %vm1484 = vcmp.eq.s32.totalorder %v1424, 1
  %vm1485 = vcmp.eq.s32.totalorder %v1427, 1
  %vm1486 = vcmp.eq.s32.totalorder %v1430, 1
  %vm1487 = vcmp.eq.s32.totalorder %v1433, 1
  %vm1488 = vcmp.eq.s32.totalorder %v1436, 1
  %vm1489 = vcmp.eq.s32.totalorder %v1439, 1
  %vm1490 = vcmp.eq.s32.totalorder %v1442, 1
  %vm1491 = vcmp.eq.s32.totalorder %v1445, 1
  %vm1492 = vcmp.eq.s32.totalorder %v1448, 1
  %vm1493 = vcmp.eq.s32.totalorder %v1451, 1
  %vm1494 = vcmp.eq.s32.totalorder %v1454, 1
  %vm1495 = vcmp.eq.s32.totalorder %v1457, 1
  %v1496 = vsel %vm1458, %v86, -inf
  %v1497 = vsel %vm1459, %v87, -inf
  %v1498 = vsel %vm1460, %v88, -inf
  %v1499 = vsel %vm1461, %v89, -inf
  %v1500 = vsel %vm1462, %v90, -inf
  %v1501 = vsel %vm1463, %v91, -inf
  %v1502 = vsel %vm1464, %v92, -inf
  %v1503 = vsel %vm1465, %v93, -inf
  %v1504 = vsel %vm1466, %v94, -inf
  %v1505 = vsel %vm1467, %v95, -inf
  %v1506 = vsel %vm1468, %v96, -inf
  %v1507 = vsel %vm1469, %v97, -inf
  %v1508 = vsel %vm1470, %v98, -inf
  %v1509 = vsel %vm1471, %v99, -inf
  %v1510 = vsel %vm1472, %v100, -inf
  %v1511 = vsel %vm1473, %v101, -inf
  %v1512 = vsel %vm1474, %v102, -inf
  %v1513 = vsel %vm1475, %v103, -inf
  %v1514 = vsel %vm1476, %v104, -inf
  %v1515 = vsel %vm1477, %v105, -inf
  %v1516 = vsel %vm1478, %v106, -inf
  %v1517 = vsel %vm1479, %v107, -inf
  %v1518 = vsel %vm1480, %v108, -inf
  %v1519 = vsel %vm1481, %v109, -inf
  %v1520 = vsel %vm1482, %v110, -inf
  %v1521 = vsel %vm1483, %v111, -inf
  %v1522 = vsel %vm1484, %v112, -inf
  %v1523 = vsel %vm1485, %v113, -inf
  %v1524 = vsel %vm1486, %v114, -inf
  %v1525 = vsel %vm1487, %v115, -inf
  %v1526 = vsel %vm1488, %v116, -inf
  %v1527 = vsel %vm1489, %v117, -inf
  %v1528 = vsel %vm1490, %v118, -inf
  %v1529 = vsel %vm1491, %v119, -inf
  %v1530 = vsel %vm1492, %v120, -inf
  %v1531 = vsel %vm1493, %v121, -inf
  %v1532 = vsel %vm1494, %v122, -inf
  %v1533 = vsel %vm1495, %v123, -inf
  %v1534 = vmax.f32 %v1496, %v1500
  %v1535 = vmax.f32 %v1497, %v1501
  %v1536 = vmax.f32 %v1498, %v1502
  %v1537 = vmax.f32 %v1499, %v1503
  %v1538 = vmax.f32 %v1534, %v1504
  %v1539 = vmax.f32 %v1535, %v1505
  %v1540 = vmax.f32 %v1536, %v1506
  %v1541 = vmax.f32 %v1537, %v1507
  %v1542 = vmax.f32 %v1538, %v1508
  %v1543 = vmax.f32 %v1539, %v1509
  %v1544 = vmax.f32 %v1540, %v1510
  %v1545 = vmax.f32 %v1541, %v1511
  %v1546 = vmax.f32 %v1542, %v1512
  %v1547 = vmax.f32 %v1543, %v1513
  %v1548 = vmax.f32 %v1544, %v1514
  %v1549 = vmax.f32 %v1545, %v1515
  %v1550 = vmax.f32 %v1546, %v1516
  %v1551 = vmax.f32 %v1547, %v1517
  %v1552 = vmax.f32 %v1548, %v1518
  %v1553 = vmax.f32 %v1549, %v1519
  %v1554 = vmax.f32 %v1550, %v1520
  %v1555 = vmax.f32 %v1551, %v1521
  %v1556 = vmax.f32 %v1552, %v1522
  %v1557 = vmax.f32 %v1553, %v1523
  %v1558 = vmax.f32 %v1554, %v1524
  %v1559 = vmax.f32 %v1555, %v1525
  %v1560 = vmax.f32 %v1556, %v1526
  %v1561 = vmax.f32 %v1557, %v1527
  %v1562 = vmax.f32 %v1558, %v1528
  %v1563 = vmax.f32 %v1559, %v1529
  %v1564 = vmax.f32 %v1560, %v1530
  %v1565 = vmax.f32 %v1561, %v1531
  %v1566 = vmax.f32 %v1562, %v1532
  %v1567 = vmax.f32 %v1563, %v1533
  %v1568 = vmax.f32 %v1566, %v1567
  %v1569 = vmax.f32 %v1564, %v1565
  %v1570 = vmax.f32 %v1568, %v1569
  %v1571 = vrot.slane %v1570, 4
  %v1572 = vmax.f32 %v1570, %v1571
  %v1573 = vrot.slane %v1572, 2
  %v1574 = vmax.f32 %v1572, %v1573
  %v1575 = vrot.slane %v1574, 1
  %v1576 = vmax.f32 %v1574, %v1575
  %s1577 = sadd.s32 %s85, 4
  %v1578 = vstv %s1577
  %vm1579 = vcmp.eq.s32.totalorder %v125, %v1578
  %vm1580 = vcmp.eq.s32.totalorder %v126, %v1578
  %vm1581 = vcmp.eq.s32.totalorder %v127, %v1578
  %vm1582 = vcmp.eq.s32.totalorder %v128, %v1578
  %vm1583 = vcmp.eq.s32.totalorder %v129, %v1578
  %vm1584 = vcmp.eq.s32.totalorder %v130, %v1578
  %vm1585 = vcmp.eq.s32.totalorder %v131, %v1578
  %vm1586 = vcmp.eq.s32.totalorder %v132, %v1578
  %vm1587 = vcmp.eq.s32.totalorder %v133, %v1578
  %vm1588 = vcmp.eq.s32.totalorder %v134, %v1578
  %vm1589 = vcmp.eq.s32.totalorder %v135, %v1578
  %vm1590 = vcmp.eq.s32.totalorder %v136, %v1578
  %vm1591 = vcmp.eq.s32.totalorder %v137, %v1578
  %vm1592 = vcmp.eq.s32.totalorder %v138, %v1578
  %vm1593 = vcmp.eq.s32.totalorder %v139, %v1578
  %vm1594 = vcmp.eq.s32.totalorder %v140, %v1578
  %vm1595 = vcmp.eq.s32.totalorder %v141, %v1578
  %vm1596 = vcmp.eq.s32.totalorder %v142, %v1578
  %vm1597 = vcmp.eq.s32.totalorder %v143, %v1578
  %vm1598 = vcmp.eq.s32.totalorder %v144, %v1578
  %vm1599 = vcmp.eq.s32.totalorder %v145, %v1578
  %vm1600 = vcmp.eq.s32.totalorder %v146, %v1578
  %vm1601 = vcmp.eq.s32.totalorder %v147, %v1578
  %vm1602 = vcmp.eq.s32.totalorder %v148, %v1578
  %vm1603 = vcmp.eq.s32.totalorder %v149, %v1578
  %vm1604 = vcmp.eq.s32.totalorder %v150, %v1578
  %vm1605 = vcmp.eq.s32.totalorder %v151, %v1578
  %vm1606 = vcmp.eq.s32.totalorder %v152, %v1578
  %vm1607 = vcmp.eq.s32.totalorder %v153, %v1578
  %vm1608 = vcmp.eq.s32.totalorder %v154, %v1578
  %vm1609 = vcmp.eq.s32.totalorder %v155, %v1578
  %vm1610 = vcmp.eq.s32.totalorder %v156, %v1578
  %vm1611 = vcmp.eq.s32.totalorder %v157, %v1578
  %vm1612 = vcmp.eq.s32.totalorder %v158, %v1578
  %vm1613 = vcmp.eq.s32.totalorder %v159, %v1578
  %vm1614 = vcmp.eq.s32.totalorder %v160, %v1578
  %vm1615 = vcmp.eq.s32.totalorder %v161, %v1578
  %vm1616 = vcmp.eq.s32.totalorder %v162, %v1578
  %v1617 = vsel %vm1579, 1, 0
  %v1618 = vsel %vm1580, 1, 0
  %v1619 = vsel %vm1581, 1, 0
  %v1620 = vsel %vm1582, 1, 0
  %v1621 = vsel %vm1583, 1, 0
  %v1622 = vsel %vm1584, 1, 0
  %v1623 = vsel %vm1585, 1, 0
  %v1624 = vsel %vm1586, 1, 0
  %v1625 = vsel %vm1587, 1, 0
  %v1626 = vsel %vm1588, 1, 0
  %v1627 = vsel %vm1589, 1, 0
  %v1628 = vsel %vm1590, 1, 0
  %v1629 = vsel %vm1591, 1, 0
  %v1630 = vsel %vm1592, 1, 0
  %v1631 = vsel %vm1593, 1, 0
  %v1632 = vsel %vm1594, 1, 0
  %v1633 = vsel %vm1595, 1, 0
  %v1634 = vsel %vm1596, 1, 0
  %v1635 = vsel %vm1597, 1, 0
  %v1636 = vsel %vm1598, 1, 0
  %v1637 = vsel %vm1599, 1, 0
  %v1638 = vsel %vm1600, 1, 0
  %v1639 = vsel %vm1601, 1, 0
  %v1640 = vsel %vm1602, 1, 0
  %v1641 = vsel %vm1603, 1, 0
  %v1642 = vsel %vm1604, 1, 0
  %v1643 = vsel %vm1605, 1, 0
  %v1644 = vsel %vm1606, 1, 0
  %v1645 = vsel %vm1607, 1, 0
  %v1646 = vsel %vm1608, 1, 0
  %v1647 = vsel %vm1609, 1, 0
  %v1648 = vsel %vm1610, 1, 0
  %v1649 = vsel %vm1611, 1, 0
  %v1650 = vsel %vm1612, 1, 0
  %v1651 = vsel %vm1613, 1, 0
  %v1652 = vsel %vm1614, 1, 0
  %v1653 = vsel %vm1615, 1, 0
  %v1654 = vsel %vm1616, 1, 0
  %1655 = vset.pattern.permute.xlu0 0
  %1656 = vperm.xlu0 %1655, %v1617
  %v1657 = vpop.permute.xlu0 %1656
  %1658 = vset.pattern.permute.xlu0 0
  %1659 = vperm.xlu0 %1658, %v1618
  %v1660 = vpop.permute.xlu0 %1659
  %1661 = vset.pattern.permute.xlu0 0
  %1662 = vperm.xlu0 %1661, %v1619
  %v1663 = vpop.permute.xlu0 %1662
  %1664 = vset.pattern.permute.xlu0 0
  %1665 = vperm.xlu0 %1664, %v1620
  %v1666 = vpop.permute.xlu0 %1665
  %1667 = vset.pattern.permute.xlu0 0
  %1668 = vperm.xlu0 %1667, %v1621
  %v1669 = vpop.permute.xlu0 %1668
  %1670 = vset.pattern.permute.xlu0 0
  %1671 = vperm.xlu0 %1670, %v1622
  %v1672 = vpop.permute.xlu0 %1671
  %1673 = vset.pattern.permute.xlu0 0
  %1674 = vperm.xlu0 %1673, %v1623
  %v1675 = vpop.permute.xlu0 %1674
  %1676 = vset.pattern.permute.xlu0 0
  %1677 = vperm.xlu0 %1676, %v1624
  %v1678 = vpop.permute.xlu0 %1677
  %1679 = vset.pattern.permute.xlu0 0
  %1680 = vperm.xlu0 %1679, %v1625
  %v1681 = vpop.permute.xlu0 %1680
  %1682 = vset.pattern.permute.xlu0 0
  %1683 = vperm.xlu0 %1682, %v1626
  %v1684 = vpop.permute.xlu0 %1683
  %1685 = vset.pattern.permute.xlu0 0
  %1686 = vperm.xlu0 %1685, %v1627
  %v1687 = vpop.permute.xlu0 %1686
  %1688 = vset.pattern.permute.xlu0 0
  %1689 = vperm.xlu0 %1688, %v1628
  %v1690 = vpop.permute.xlu0 %1689
  %1691 = vset.pattern.permute.xlu0 0
  %1692 = vperm.xlu0 %1691, %v1629
  %v1693 = vpop.permute.xlu0 %1692
  %1694 = vset.pattern.permute.xlu0 0
  %1695 = vperm.xlu0 %1694, %v1630
  %v1696 = vpop.permute.xlu0 %1695
  %1697 = vset.pattern.permute.xlu0 0
  %1698 = vperm.xlu0 %1697, %v1631
  %v1699 = vpop.permute.xlu0 %1698
  %1700 = vset.pattern.permute.xlu0 0
  %1701 = vperm.xlu0 %1700, %v1632
  %v1702 = vpop.permute.xlu0 %1701
  %1703 = vset.pattern.permute.xlu0 0
  %1704 = vperm.xlu0 %1703, %v1633
  %v1705 = vpop.permute.xlu0 %1704
  %1706 = vset.pattern.permute.xlu0 0
  %1707 = vperm.xlu0 %1706, %v1634
  %v1708 = vpop.permute.xlu0 %1707
  %1709 = vset.pattern.permute.xlu0 0
  %1710 = vperm.xlu0 %1709, %v1635
  %v1711 = vpop.permute.xlu0 %1710
  %1712 = vset.pattern.permute.xlu0 0
  %1713 = vperm.xlu0 %1712, %v1636
  %v1714 = vpop.permute.xlu0 %1713
  %1715 = vset.pattern.permute.xlu0 0
  %1716 = vperm.xlu0 %1715, %v1637
  %v1717 = vpop.permute.xlu0 %1716
  %1718 = vset.pattern.permute.xlu0 0
  %1719 = vperm.xlu0 %1718, %v1638
  %v1720 = vpop.permute.xlu0 %1719
  %1721 = vset.pattern.permute.xlu0 0
  %1722 = vperm.xlu0 %1721, %v1639
  %v1723 = vpop.permute.xlu0 %1722
  %1724 = vset.pattern.permute.xlu0 0
  %1725 = vperm.xlu0 %1724, %v1640
  %v1726 = vpop.permute.xlu0 %1725
  %1727 = vset.pattern.permute.xlu0 0
  %1728 = vperm.xlu0 %1727, %v1641
  %v1729 = vpop.permute.xlu0 %1728
  %1730 = vset.pattern.permute.xlu0 0
  %1731 = vperm.xlu0 %1730, %v1642
  %v1732 = vpop.permute.xlu0 %1731
  %1733 = vset.pattern.permute.xlu0 0
  %1734 = vperm.xlu0 %1733, %v1643
  %v1735 = vpop.permute.xlu0 %1734
  %1736 = vset.pattern.permute.xlu0 0
  %1737 = vperm.xlu0 %1736, %v1644
  %v1738 = vpop.permute.xlu0 %1737
  %1739 = vset.pattern.permute.xlu0 0
  %1740 = vperm.xlu0 %1739, %v1645
  %v1741 = vpop.permute.xlu0 %1740
  %1742 = vset.pattern.permute.xlu0 0
  %1743 = vperm.xlu0 %1742, %v1646
  %v1744 = vpop.permute.xlu0 %1743
  %1745 = vset.pattern.permute.xlu0 0
  %1746 = vperm.xlu0 %1745, %v1647
  %v1747 = vpop.permute.xlu0 %1746
  %1748 = vset.pattern.permute.xlu0 0
  %1749 = vperm.xlu0 %1748, %v1648
  %v1750 = vpop.permute.xlu0 %1749
  %1751 = vset.pattern.permute.xlu0 0
  %1752 = vperm.xlu0 %1751, %v1649
  %v1753 = vpop.permute.xlu0 %1752
  %1754 = vset.pattern.permute.xlu0 0
  %1755 = vperm.xlu0 %1754, %v1650
  %v1756 = vpop.permute.xlu0 %1755
  %1757 = vset.pattern.permute.xlu0 0
  %1758 = vperm.xlu0 %1757, %v1651
  %v1759 = vpop.permute.xlu0 %1758
  %1760 = vset.pattern.permute.xlu0 0
  %1761 = vperm.xlu0 %1760, %v1652
  %v1762 = vpop.permute.xlu0 %1761
  %1763 = vset.pattern.permute.xlu0 0
  %1764 = vperm.xlu0 %1763, %v1653
  %v1765 = vpop.permute.xlu0 %1764
  %1766 = vset.pattern.permute.xlu0 0
  %1767 = vperm.xlu0 %1766, %v1654
  %v1768 = vpop.permute.xlu0 %1767
  %vm1769 = vcmp.eq.s32.totalorder %v1657, 1
  %vm1770 = vcmp.eq.s32.totalorder %v1660, 1
  %vm1771 = vcmp.eq.s32.totalorder %v1663, 1
  %vm1772 = vcmp.eq.s32.totalorder %v1666, 1
  %vm1773 = vcmp.eq.s32.totalorder %v1669, 1
  %vm1774 = vcmp.eq.s32.totalorder %v1672, 1
  %vm1775 = vcmp.eq.s32.totalorder %v1675, 1
  %vm1776 = vcmp.eq.s32.totalorder %v1678, 1
  %vm1777 = vcmp.eq.s32.totalorder %v1681, 1
  %vm1778 = vcmp.eq.s32.totalorder %v1684, 1
  %vm1779 = vcmp.eq.s32.totalorder %v1687, 1
  %vm1780 = vcmp.eq.s32.totalorder %v1690, 1
  %vm1781 = vcmp.eq.s32.totalorder %v1693, 1
  %vm1782 = vcmp.eq.s32.totalorder %v1696, 1
  %vm1783 = vcmp.eq.s32.totalorder %v1699, 1
  %vm1784 = vcmp.eq.s32.totalorder %v1702, 1
  %vm1785 = vcmp.eq.s32.totalorder %v1705, 1
  %vm1786 = vcmp.eq.s32.totalorder %v1708, 1
  %vm1787 = vcmp.eq.s32.totalorder %v1711, 1
  %vm1788 = vcmp.eq.s32.totalorder %v1714, 1
  %vm1789 = vcmp.eq.s32.totalorder %v1717, 1
  %vm1790 = vcmp.eq.s32.totalorder %v1720, 1
  %vm1791 = vcmp.eq.s32.totalorder %v1723, 1
  %vm1792 = vcmp.eq.s32.totalorder %v1726, 1
  %vm1793 = vcmp.eq.s32.totalorder %v1729, 1
  %vm1794 = vcmp.eq.s32.totalorder %v1732, 1
  %vm1795 = vcmp.eq.s32.totalorder %v1735, 1
  %vm1796 = vcmp.eq.s32.totalorder %v1738, 1
  %vm1797 = vcmp.eq.s32.totalorder %v1741, 1
  %vm1798 = vcmp.eq.s32.totalorder %v1744, 1
  %vm1799 = vcmp.eq.s32.totalorder %v1747, 1
  %vm1800 = vcmp.eq.s32.totalorder %v1750, 1
  %vm1801 = vcmp.eq.s32.totalorder %v1753, 1
  %vm1802 = vcmp.eq.s32.totalorder %v1756, 1
  %vm1803 = vcmp.eq.s32.totalorder %v1759, 1
  %vm1804 = vcmp.eq.s32.totalorder %v1762, 1
  %vm1805 = vcmp.eq.s32.totalorder %v1765, 1
  %vm1806 = vcmp.eq.s32.totalorder %v1768, 1
  %v1807 = vsel %vm1769, %v86, -inf
  %v1808 = vsel %vm1770, %v87, -inf
  %v1809 = vsel %vm1771, %v88, -inf
  %v1810 = vsel %vm1772, %v89, -inf
  %v1811 = vsel %vm1773, %v90, -inf
  %v1812 = vsel %vm1774, %v91, -inf
  %v1813 = vsel %vm1775, %v92, -inf
  %v1814 = vsel %vm1776, %v93, -inf
  %v1815 = vsel %vm1777, %v94, -inf
  %v1816 = vsel %vm1778, %v95, -inf
  %v1817 = vsel %vm1779, %v96, -inf
  %v1818 = vsel %vm1780, %v97, -inf
  %v1819 = vsel %vm1781, %v98, -inf
  %v1820 = vsel %vm1782, %v99, -inf
  %v1821 = vsel %vm1783, %v100, -inf
  %v1822 = vsel %vm1784, %v101, -inf
  %v1823 = vsel %vm1785, %v102, -inf
  %v1824 = vsel %vm1786, %v103, -inf
  %v1825 = vsel %vm1787, %v104, -inf
  %v1826 = vsel %vm1788, %v105, -inf
  %v1827 = vsel %vm1789, %v106, -inf
  %v1828 = vsel %vm1790, %v107, -inf
  %v1829 = vsel %vm1791, %v108, -inf
  %v1830 = vsel %vm1792, %v109, -inf
  %v1831 = vsel %vm1793, %v110, -inf
  %v1832 = vsel %vm1794, %v111, -inf
  %v1833 = vsel %vm1795, %v112, -inf
  %v1834 = vsel %vm1796, %v113, -inf
  %v1835 = vsel %vm1797, %v114, -inf
  %v1836 = vsel %vm1798, %v115, -inf
  %v1837 = vsel %vm1799, %v116, -inf
  %v1838 = vsel %vm1800, %v117, -inf
  %v1839 = vsel %vm1801, %v118, -inf
  %v1840 = vsel %vm1802, %v119, -inf
  %v1841 = vsel %vm1803, %v120, -inf
  %v1842 = vsel %vm1804, %v121, -inf
  %v1843 = vsel %vm1805, %v122, -inf
  %v1844 = vsel %vm1806, %v123, -inf
  %v1845 = vmax.f32 %v1807, %v1811
  %v1846 = vmax.f32 %v1808, %v1812
  %v1847 = vmax.f32 %v1809, %v1813
  %v1848 = vmax.f32 %v1810, %v1814
  %v1849 = vmax.f32 %v1845, %v1815
  %v1850 = vmax.f32 %v1846, %v1816
  %v1851 = vmax.f32 %v1847, %v1817
  %v1852 = vmax.f32 %v1848, %v1818
  %v1853 = vmax.f32 %v1849, %v1819
  %v1854 = vmax.f32 %v1850, %v1820
  %v1855 = vmax.f32 %v1851, %v1821
  %v1856 = vmax.f32 %v1852, %v1822
  %v1857 = vmax.f32 %v1853, %v1823
  %v1858 = vmax.f32 %v1854, %v1824
  %v1859 = vmax.f32 %v1855, %v1825
  %v1860 = vmax.f32 %v1856, %v1826
  %v1861 = vmax.f32 %v1857, %v1827
  %v1862 = vmax.f32 %v1858, %v1828
  %v1863 = vmax.f32 %v1859, %v1829
  %v1864 = vmax.f32 %v1860, %v1830
  %v1865 = vmax.f32 %v1861, %v1831
  %v1866 = vmax.f32 %v1862, %v1832
  %v1867 = vmax.f32 %v1863, %v1833
  %v1868 = vmax.f32 %v1864, %v1834
  %v1869 = vmax.f32 %v1865, %v1835
  %v1870 = vmax.f32 %v1866, %v1836
  %v1871 = vmax.f32 %v1867, %v1837
  %v1872 = vmax.f32 %v1868, %v1838
  %v1873 = vmax.f32 %v1869, %v1839
  %v1874 = vmax.f32 %v1870, %v1840
  %v1875 = vmax.f32 %v1871, %v1841
  %v1876 = vmax.f32 %v1872, %v1842
  %v1877 = vmax.f32 %v1873, %v1843
  %v1878 = vmax.f32 %v1874, %v1844
  %v1879 = vmax.f32 %v1877, %v1878
  %v1880 = vmax.f32 %v1875, %v1876
  %v1881 = vmax.f32 %v1879, %v1880
  %v1882 = vrot.slane %v1881, 4
  %v1883 = vmax.f32 %v1881, %v1882
  %v1884 = vrot.slane %v1883, 2
  %v1885 = vmax.f32 %v1883, %v1884
  %v1886 = vrot.slane %v1885, 1
  %v1887 = vmax.f32 %v1885, %v1886
  %s1888 = sadd.s32 %s85, 5
  %v1889 = vstv %s1888
  %vm1890 = vcmp.eq.s32.totalorder %v125, %v1889
  %vm1891 = vcmp.eq.s32.totalorder %v126, %v1889
  %vm1892 = vcmp.eq.s32.totalorder %v127, %v1889
  %vm1893 = vcmp.eq.s32.totalorder %v128, %v1889
  %vm1894 = vcmp.eq.s32.totalorder %v129, %v1889
  %vm1895 = vcmp.eq.s32.totalorder %v130, %v1889
  %vm1896 = vcmp.eq.s32.totalorder %v131, %v1889
  %vm1897 = vcmp.eq.s32.totalorder %v132, %v1889
  %vm1898 = vcmp.eq.s32.totalorder %v133, %v1889
  %vm1899 = vcmp.eq.s32.totalorder %v134, %v1889
  %vm1900 = vcmp.eq.s32.totalorder %v135, %v1889
  %vm1901 = vcmp.eq.s32.totalorder %v136, %v1889
  %vm1902 = vcmp.eq.s32.totalorder %v137, %v1889
  %vm1903 = vcmp.eq.s32.totalorder %v138, %v1889
  %vm1904 = vcmp.eq.s32.totalorder %v139, %v1889
  %vm1905 = vcmp.eq.s32.totalorder %v140, %v1889
  %vm1906 = vcmp.eq.s32.totalorder %v141, %v1889
  %vm1907 = vcmp.eq.s32.totalorder %v142, %v1889
  %vm1908 = vcmp.eq.s32.totalorder %v143, %v1889
  %vm1909 = vcmp.eq.s32.totalorder %v144, %v1889
  %vm1910 = vcmp.eq.s32.totalorder %v145, %v1889
  %vm1911 = vcmp.eq.s32.totalorder %v146, %v1889
  %vm1912 = vcmp.eq.s32.totalorder %v147, %v1889
  %vm1913 = vcmp.eq.s32.totalorder %v148, %v1889
  %vm1914 = vcmp.eq.s32.totalorder %v149, %v1889
  %vm1915 = vcmp.eq.s32.totalorder %v150, %v1889
  %vm1916 = vcmp.eq.s32.totalorder %v151, %v1889
  %vm1917 = vcmp.eq.s32.totalorder %v152, %v1889
  %vm1918 = vcmp.eq.s32.totalorder %v153, %v1889
  %vm1919 = vcmp.eq.s32.totalorder %v154, %v1889
  %vm1920 = vcmp.eq.s32.totalorder %v155, %v1889
  %vm1921 = vcmp.eq.s32.totalorder %v156, %v1889
  %vm1922 = vcmp.eq.s32.totalorder %v157, %v1889
  %vm1923 = vcmp.eq.s32.totalorder %v158, %v1889
  %vm1924 = vcmp.eq.s32.totalorder %v159, %v1889
  %vm1925 = vcmp.eq.s32.totalorder %v160, %v1889
  %vm1926 = vcmp.eq.s32.totalorder %v161, %v1889
  %vm1927 = vcmp.eq.s32.totalorder %v162, %v1889
  %v1928 = vsel %vm1890, 1, 0
  %v1929 = vsel %vm1891, 1, 0
  %v1930 = vsel %vm1892, 1, 0
  %v1931 = vsel %vm1893, 1, 0
  %v1932 = vsel %vm1894, 1, 0
  %v1933 = vsel %vm1895, 1, 0
  %v1934 = vsel %vm1896, 1, 0
  %v1935 = vsel %vm1897, 1, 0
  %v1936 = vsel %vm1898, 1, 0
  %v1937 = vsel %vm1899, 1, 0
  %v1938 = vsel %vm1900, 1, 0
  %v1939 = vsel %vm1901, 1, 0
  %v1940 = vsel %vm1902, 1, 0
  %v1941 = vsel %vm1903, 1, 0
  %v1942 = vsel %vm1904, 1, 0
  %v1943 = vsel %vm1905, 1, 0
  %v1944 = vsel %vm1906, 1, 0
  %v1945 = vsel %vm1907, 1, 0
  %v1946 = vsel %vm1908, 1, 0
  %v1947 = vsel %vm1909, 1, 0
  %v1948 = vsel %vm1910, 1, 0
  %v1949 = vsel %vm1911, 1, 0
  %v1950 = vsel %vm1912, 1, 0
  %v1951 = vsel %vm1913, 1, 0
  %v1952 = vsel %vm1914, 1, 0
  %v1953 = vsel %vm1915, 1, 0
  %v1954 = vsel %vm1916, 1, 0
  %v1955 = vsel %vm1917, 1, 0
  %v1956 = vsel %vm1918, 1, 0
  %v1957 = vsel %vm1919, 1, 0
  %v1958 = vsel %vm1920, 1, 0
  %v1959 = vsel %vm1921, 1, 0
  %v1960 = vsel %vm1922, 1, 0
  %v1961 = vsel %vm1923, 1, 0
  %v1962 = vsel %vm1924, 1, 0
  %v1963 = vsel %vm1925, 1, 0
  %v1964 = vsel %vm1926, 1, 0
  %v1965 = vsel %vm1927, 1, 0
  %1966 = vset.pattern.permute.xlu0 0
  %1967 = vperm.xlu0 %1966, %v1928
  %v1968 = vpop.permute.xlu0 %1967
  %1969 = vset.pattern.permute.xlu0 0
  %1970 = vperm.xlu0 %1969, %v1929
  %v1971 = vpop.permute.xlu0 %1970
  %1972 = vset.pattern.permute.xlu0 0
  %1973 = vperm.xlu0 %1972, %v1930
  %v1974 = vpop.permute.xlu0 %1973
  %1975 = vset.pattern.permute.xlu0 0
  %1976 = vperm.xlu0 %1975, %v1931
  %v1977 = vpop.permute.xlu0 %1976
  %1978 = vset.pattern.permute.xlu0 0
  %1979 = vperm.xlu0 %1978, %v1932
  %v1980 = vpop.permute.xlu0 %1979
  %1981 = vset.pattern.permute.xlu0 0
  %1982 = vperm.xlu0 %1981, %v1933
  %v1983 = vpop.permute.xlu0 %1982
  %1984 = vset.pattern.permute.xlu0 0
  %1985 = vperm.xlu0 %1984, %v1934
  %v1986 = vpop.permute.xlu0 %1985
  %1987 = vset.pattern.permute.xlu0 0
  %1988 = vperm.xlu0 %1987, %v1935
  %v1989 = vpop.permute.xlu0 %1988
  %1990 = vset.pattern.permute.xlu0 0
  %1991 = vperm.xlu0 %1990, %v1936
  %v1992 = vpop.permute.xlu0 %1991
  %1993 = vset.pattern.permute.xlu0 0
  %1994 = vperm.xlu0 %1993, %v1937
  %v1995 = vpop.permute.xlu0 %1994
  %1996 = vset.pattern.permute.xlu0 0
  %1997 = vperm.xlu0 %1996, %v1938
  %v1998 = vpop.permute.xlu0 %1997
  %1999 = vset.pattern.permute.xlu0 0
  %2000 = vperm.xlu0 %1999, %v1939
  %v2001 = vpop.permute.xlu0 %2000
  %2002 = vset.pattern.permute.xlu0 0
  %2003 = vperm.xlu0 %2002, %v1940
  %v2004 = vpop.permute.xlu0 %2003
  %2005 = vset.pattern.permute.xlu0 0
  %2006 = vperm.xlu0 %2005, %v1941
  %v2007 = vpop.permute.xlu0 %2006
  %2008 = vset.pattern.permute.xlu0 0
  %2009 = vperm.xlu0 %2008, %v1942
  %v2010 = vpop.permute.xlu0 %2009
  %2011 = vset.pattern.permute.xlu0 0
  %2012 = vperm.xlu0 %2011, %v1943
  %v2013 = vpop.permute.xlu0 %2012
  %2014 = vset.pattern.permute.xlu0 0
  %2015 = vperm.xlu0 %2014, %v1944
  %v2016 = vpop.permute.xlu0 %2015
  %2017 = vset.pattern.permute.xlu0 0
  %2018 = vperm.xlu0 %2017, %v1945
  %v2019 = vpop.permute.xlu0 %2018
  %2020 = vset.pattern.permute.xlu0 0
  %2021 = vperm.xlu0 %2020, %v1946
  %v2022 = vpop.permute.xlu0 %2021
  %2023 = vset.pattern.permute.xlu0 0
  %2024 = vperm.xlu0 %2023, %v1947
  %v2025 = vpop.permute.xlu0 %2024
  %2026 = vset.pattern.permute.xlu0 0
  %2027 = vperm.xlu0 %2026, %v1948
  %v2028 = vpop.permute.xlu0 %2027
  %2029 = vset.pattern.permute.xlu0 0
  %2030 = vperm.xlu0 %2029, %v1949
  %v2031 = vpop.permute.xlu0 %2030
  %2032 = vset.pattern.permute.xlu0 0
  %2033 = vperm.xlu0 %2032, %v1950
  %v2034 = vpop.permute.xlu0 %2033
  %2035 = vset.pattern.permute.xlu0 0
  %2036 = vperm.xlu0 %2035, %v1951
  %v2037 = vpop.permute.xlu0 %2036
  %2038 = vset.pattern.permute.xlu0 0
  %2039 = vperm.xlu0 %2038, %v1952
  %v2040 = vpop.permute.xlu0 %2039
  %2041 = vset.pattern.permute.xlu0 0
  %2042 = vperm.xlu0 %2041, %v1953
  %v2043 = vpop.permute.xlu0 %2042
  %2044 = vset.pattern.permute.xlu0 0
  %2045 = vperm.xlu0 %2044, %v1954
  %v2046 = vpop.permute.xlu0 %2045
  %2047 = vset.pattern.permute.xlu0 0
  %2048 = vperm.xlu0 %2047, %v1955
  %v2049 = vpop.permute.xlu0 %2048
  %2050 = vset.pattern.permute.xlu0 0
  %2051 = vperm.xlu0 %2050, %v1956
  %v2052 = vpop.permute.xlu0 %2051
  %2053 = vset.pattern.permute.xlu0 0
  %2054 = vperm.xlu0 %2053, %v1957
  %v2055 = vpop.permute.xlu0 %2054
  %2056 = vset.pattern.permute.xlu0 0
  %2057 = vperm.xlu0 %2056, %v1958
  %v2058 = vpop.permute.xlu0 %2057
  %2059 = vset.pattern.permute.xlu0 0
  %2060 = vperm.xlu0 %2059, %v1959
  %v2061 = vpop.permute.xlu0 %2060
  %2062 = vset.pattern.permute.xlu0 0
  %2063 = vperm.xlu0 %2062, %v1960
  %v2064 = vpop.permute.xlu0 %2063
  %2065 = vset.pattern.permute.xlu0 0
  %2066 = vperm.xlu0 %2065, %v1961
  %v2067 = vpop.permute.xlu0 %2066
  %2068 = vset.pattern.permute.xlu0 0
  %2069 = vperm.xlu0 %2068, %v1962
  %v2070 = vpop.permute.xlu0 %2069
  %2071 = vset.pattern.permute.xlu0 0
  %2072 = vperm.xlu0 %2071, %v1963
  %v2073 = vpop.permute.xlu0 %2072
  %2074 = vset.pattern.permute.xlu0 0
  %2075 = vperm.xlu0 %2074, %v1964
  %v2076 = vpop.permute.xlu0 %2075
  %2077 = vset.pattern.permute.xlu0 0
  %2078 = vperm.xlu0 %2077, %v1965
  %v2079 = vpop.permute.xlu0 %2078
  %vm2080 = vcmp.eq.s32.totalorder %v1968, 1
  %vm2081 = vcmp.eq.s32.totalorder %v1971, 1
  %vm2082 = vcmp.eq.s32.totalorder %v1974, 1
  %vm2083 = vcmp.eq.s32.totalorder %v1977, 1
  %vm2084 = vcmp.eq.s32.totalorder %v1980, 1
  %vm2085 = vcmp.eq.s32.totalorder %v1983, 1
  %vm2086 = vcmp.eq.s32.totalorder %v1986, 1
  %vm2087 = vcmp.eq.s32.totalorder %v1989, 1
  %vm2088 = vcmp.eq.s32.totalorder %v1992, 1
  %vm2089 = vcmp.eq.s32.totalorder %v1995, 1
  %vm2090 = vcmp.eq.s32.totalorder %v1998, 1
  %vm2091 = vcmp.eq.s32.totalorder %v2001, 1
  %vm2092 = vcmp.eq.s32.totalorder %v2004, 1
  %vm2093 = vcmp.eq.s32.totalorder %v2007, 1
  %vm2094 = vcmp.eq.s32.totalorder %v2010, 1
  %vm2095 = vcmp.eq.s32.totalorder %v2013, 1
  %vm2096 = vcmp.eq.s32.totalorder %v2016, 1
  %vm2097 = vcmp.eq.s32.totalorder %v2019, 1
  %vm2098 = vcmp.eq.s32.totalorder %v2022, 1
  %vm2099 = vcmp.eq.s32.totalorder %v2025, 1
  %vm2100 = vcmp.eq.s32.totalorder %v2028, 1
  %vm2101 = vcmp.eq.s32.totalorder %v2031, 1
  %vm2102 = vcmp.eq.s32.totalorder %v2034, 1
  %vm2103 = vcmp.eq.s32.totalorder %v2037, 1
  %vm2104 = vcmp.eq.s32.totalorder %v2040, 1
  %vm2105 = vcmp.eq.s32.totalorder %v2043, 1
  %vm2106 = vcmp.eq.s32.totalorder %v2046, 1
  %vm2107 = vcmp.eq.s32.totalorder %v2049, 1
  %vm2108 = vcmp.eq.s32.totalorder %v2052, 1
  %vm2109 = vcmp.eq.s32.totalorder %v2055, 1
  %vm2110 = vcmp.eq.s32.totalorder %v2058, 1
  %vm2111 = vcmp.eq.s32.totalorder %v2061, 1
  %vm2112 = vcmp.eq.s32.totalorder %v2064, 1
  %vm2113 = vcmp.eq.s32.totalorder %v2067, 1
  %vm2114 = vcmp.eq.s32.totalorder %v2070, 1
  %vm2115 = vcmp.eq.s32.totalorder %v2073, 1
  %vm2116 = vcmp.eq.s32.totalorder %v2076, 1
  %vm2117 = vcmp.eq.s32.totalorder %v2079, 1
  %v2118 = vsel %vm2080, %v86, -inf
  %v2119 = vsel %vm2081, %v87, -inf
  %v2120 = vsel %vm2082, %v88, -inf
  %v2121 = vsel %vm2083, %v89, -inf
  %v2122 = vsel %vm2084, %v90, -inf
  %v2123 = vsel %vm2085, %v91, -inf
  %v2124 = vsel %vm2086, %v92, -inf
  %v2125 = vsel %vm2087, %v93, -inf
  %v2126 = vsel %vm2088, %v94, -inf
  %v2127 = vsel %vm2089, %v95, -inf
  %v2128 = vsel %vm2090, %v96, -inf
  %v2129 = vsel %vm2091, %v97, -inf
  %v2130 = vsel %vm2092, %v98, -inf
  %v2131 = vsel %vm2093, %v99, -inf
  %v2132 = vsel %vm2094, %v100, -inf
  %v2133 = vsel %vm2095, %v101, -inf
  %v2134 = vsel %vm2096, %v102, -inf
  %v2135 = vsel %vm2097, %v103, -inf
  %v2136 = vsel %vm2098, %v104, -inf
  %v2137 = vsel %vm2099, %v105, -inf
  %v2138 = vsel %vm2100, %v106, -inf
  %v2139 = vsel %vm2101, %v107, -inf
  %v2140 = vsel %vm2102, %v108, -inf
  %v2141 = vsel %vm2103, %v109, -inf
  %v2142 = vsel %vm2104, %v110, -inf
  %v2143 = vsel %vm2105, %v111, -inf
  %v2144 = vsel %vm2106, %v112, -inf
  %v2145 = vsel %vm2107, %v113, -inf
  %v2146 = vsel %vm2108, %v114, -inf
  %v2147 = vsel %vm2109, %v115, -inf
  %v2148 = vsel %vm2110, %v116, -inf
  %v2149 = vsel %vm2111, %v117, -inf
  %v2150 = vsel %vm2112, %v118, -inf
  %v2151 = vsel %vm2113, %v119, -inf
  %v2152 = vsel %vm2114, %v120, -inf
  %v2153 = vsel %vm2115, %v121, -inf
  %v2154 = vsel %vm2116, %v122, -inf
  %v2155 = vsel %vm2117, %v123, -inf
  %v2156 = vmax.f32 %v2118, %v2122
  %v2157 = vmax.f32 %v2119, %v2123
  %v2158 = vmax.f32 %v2120, %v2124
  %v2159 = vmax.f32 %v2121, %v2125
  %v2160 = vmax.f32 %v2156, %v2126
  %v2161 = vmax.f32 %v2157, %v2127
  %v2162 = vmax.f32 %v2158, %v2128
  %v2163 = vmax.f32 %v2159, %v2129
  %v2164 = vmax.f32 %v2160, %v2130
  %v2165 = vmax.f32 %v2161, %v2131
  %v2166 = vmax.f32 %v2162, %v2132
  %v2167 = vmax.f32 %v2163, %v2133
  %v2168 = vmax.f32 %v2164, %v2134
  %v2169 = vmax.f32 %v2165, %v2135
  %v2170 = vmax.f32 %v2166, %v2136
  %v2171 = vmax.f32 %v2167, %v2137
  %v2172 = vmax.f32 %v2168, %v2138
  %v2173 = vmax.f32 %v2169, %v2139
  %v2174 = vmax.f32 %v2170, %v2140
  %v2175 = vmax.f32 %v2171, %v2141
  %v2176 = vmax.f32 %v2172, %v2142
  %v2177 = vmax.f32 %v2173, %v2143
  %v2178 = vmax.f32 %v2174, %v2144
  %v2179 = vmax.f32 %v2175, %v2145
  %v2180 = vmax.f32 %v2176, %v2146
  %v2181 = vmax.f32 %v2177, %v2147
  %v2182 = vmax.f32 %v2178, %v2148
  %v2183 = vmax.f32 %v2179, %v2149
  %v2184 = vmax.f32 %v2180, %v2150
  %v2185 = vmax.f32 %v2181, %v2151
  %v2186 = vmax.f32 %v2182, %v2152
  %v2187 = vmax.f32 %v2183, %v2153
  %v2188 = vmax.f32 %v2184, %v2154
  %v2189 = vmax.f32 %v2185, %v2155
  %v2190 = vmax.f32 %v2188, %v2189
  %v2191 = vmax.f32 %v2186, %v2187
  %v2192 = vmax.f32 %v2190, %v2191
  %v2193 = vrot.slane %v2192, 4
  %v2194 = vmax.f32 %v2192, %v2193
  %v2195 = vrot.slane %v2194, 2
  %v2196 = vmax.f32 %v2194, %v2195
  %v2197 = vrot.slane %v2196, 1
  %v2198 = vmax.f32 %v2196, %v2197
  %s2199 = sadd.s32 %s85, 6
  %v2200 = vstv %s2199
  %vm2201 = vcmp.eq.s32.totalorder %v125, %v2200
  %vm2202 = vcmp.eq.s32.totalorder %v126, %v2200
  %vm2203 = vcmp.eq.s32.totalorder %v127, %v2200
  %vm2204 = vcmp.eq.s32.totalorder %v128, %v2200
  %vm2205 = vcmp.eq.s32.totalorder %v129, %v2200
  %vm2206 = vcmp.eq.s32.totalorder %v130, %v2200
  %vm2207 = vcmp.eq.s32.totalorder %v131, %v2200
  %vm2208 = vcmp.eq.s32.totalorder %v132, %v2200
  %vm2209 = vcmp.eq.s32.totalorder %v133, %v2200
  %vm2210 = vcmp.eq.s32.totalorder %v134, %v2200
  %vm2211 = vcmp.eq.s32.totalorder %v135, %v2200
  %vm2212 = vcmp.eq.s32.totalorder %v136, %v2200
  %vm2213 = vcmp.eq.s32.totalorder %v137, %v2200
  %vm2214 = vcmp.eq.s32.totalorder %v138, %v2200
  %vm2215 = vcmp.eq.s32.totalorder %v139, %v2200
  %vm2216 = vcmp.eq.s32.totalorder %v140, %v2200
  %vm2217 = vcmp.eq.s32.totalorder %v141, %v2200
  %vm2218 = vcmp.eq.s32.totalorder %v142, %v2200
  %vm2219 = vcmp.eq.s32.totalorder %v143, %v2200
  %vm2220 = vcmp.eq.s32.totalorder %v144, %v2200
  %vm2221 = vcmp.eq.s32.totalorder %v145, %v2200
  %vm2222 = vcmp.eq.s32.totalorder %v146, %v2200
  %vm2223 = vcmp.eq.s32.totalorder %v147, %v2200
  %vm2224 = vcmp.eq.s32.totalorder %v148, %v2200
  %vm2225 = vcmp.eq.s32.totalorder %v149, %v2200
  %vm2226 = vcmp.eq.s32.totalorder %v150, %v2200
  %vm2227 = vcmp.eq.s32.totalorder %v151, %v2200
  %vm2228 = vcmp.eq.s32.totalorder %v152, %v2200
  %vm2229 = vcmp.eq.s32.totalorder %v153, %v2200
  %vm2230 = vcmp.eq.s32.totalorder %v154, %v2200
  %vm2231 = vcmp.eq.s32.totalorder %v155, %v2200
  %vm2232 = vcmp.eq.s32.totalorder %v156, %v2200
  %vm2233 = vcmp.eq.s32.totalorder %v157, %v2200
  %vm2234 = vcmp.eq.s32.totalorder %v158, %v2200
  %vm2235 = vcmp.eq.s32.totalorder %v159, %v2200
  %vm2236 = vcmp.eq.s32.totalorder %v160, %v2200
  %vm2237 = vcmp.eq.s32.totalorder %v161, %v2200
  %vm2238 = vcmp.eq.s32.totalorder %v162, %v2200
  %v2239 = vsel %vm2201, 1, 0
  %v2240 = vsel %vm2202, 1, 0
  %v2241 = vsel %vm2203, 1, 0
  %v2242 = vsel %vm2204, 1, 0
  %v2243 = vsel %vm2205, 1, 0
  %v2244 = vsel %vm2206, 1, 0
  %v2245 = vsel %vm2207, 1, 0
  %v2246 = vsel %vm2208, 1, 0
  %v2247 = vsel %vm2209, 1, 0
  %v2248 = vsel %vm2210, 1, 0
  %v2249 = vsel %vm2211, 1, 0
  %v2250 = vsel %vm2212, 1, 0
  %v2251 = vsel %vm2213, 1, 0
  %v2252 = vsel %vm2214, 1, 0
  %v2253 = vsel %vm2215, 1, 0
  %v2254 = vsel %vm2216, 1, 0
  %v2255 = vsel %vm2217, 1, 0
  %v2256 = vsel %vm2218, 1, 0
  %v2257 = vsel %vm2219, 1, 0
  %v2258 = vsel %vm2220, 1, 0
  %v2259 = vsel %vm2221, 1, 0
  %v2260 = vsel %vm2222, 1, 0
  %v2261 = vsel %vm2223, 1, 0
  %v2262 = vsel %vm2224, 1, 0
  %v2263 = vsel %vm2225, 1, 0
  %v2264 = vsel %vm2226, 1, 0
  %v2265 = vsel %vm2227, 1, 0
  %v2266 = vsel %vm2228, 1, 0
  %v2267 = vsel %vm2229, 1, 0
  %v2268 = vsel %vm2230, 1, 0
  %v2269 = vsel %vm2231, 1, 0
  %v2270 = vsel %vm2232, 1, 0
  %v2271 = vsel %vm2233, 1, 0
  %v2272 = vsel %vm2234, 1, 0
  %v2273 = vsel %vm2235, 1, 0
  %v2274 = vsel %vm2236, 1, 0
  %v2275 = vsel %vm2237, 1, 0
  %v2276 = vsel %vm2238, 1, 0
  %2277 = vset.pattern.permute.xlu0 0
  %2278 = vperm.xlu0 %2277, %v2239
  %v2279 = vpop.permute.xlu0 %2278
  %2280 = vset.pattern.permute.xlu0 0
  %2281 = vperm.xlu0 %2280, %v2240
  %v2282 = vpop.permute.xlu0 %2281
  %2283 = vset.pattern.permute.xlu0 0
  %2284 = vperm.xlu0 %2283, %v2241
  %v2285 = vpop.permute.xlu0 %2284
  %2286 = vset.pattern.permute.xlu0 0
  %2287 = vperm.xlu0 %2286, %v2242
  %v2288 = vpop.permute.xlu0 %2287
  %2289 = vset.pattern.permute.xlu0 0
  %2290 = vperm.xlu0 %2289, %v2243
  %v2291 = vpop.permute.xlu0 %2290
  %2292 = vset.pattern.permute.xlu0 0
  %2293 = vperm.xlu0 %2292, %v2244
  %v2294 = vpop.permute.xlu0 %2293
  %2295 = vset.pattern.permute.xlu0 0
  %2296 = vperm.xlu0 %2295, %v2245
  %v2297 = vpop.permute.xlu0 %2296
  %2298 = vset.pattern.permute.xlu0 0
  %2299 = vperm.xlu0 %2298, %v2246
  %v2300 = vpop.permute.xlu0 %2299
  %2301 = vset.pattern.permute.xlu0 0
  %2302 = vperm.xlu0 %2301, %v2247
  %v2303 = vpop.permute.xlu0 %2302
  %2304 = vset.pattern.permute.xlu0 0
  %2305 = vperm.xlu0 %2304, %v2248
  %v2306 = vpop.permute.xlu0 %2305
  %2307 = vset.pattern.permute.xlu0 0
  %2308 = vperm.xlu0 %2307, %v2249
  %v2309 = vpop.permute.xlu0 %2308
  %2310 = vset.pattern.permute.xlu0 0
  %2311 = vperm.xlu0 %2310, %v2250
  %v2312 = vpop.permute.xlu0 %2311
  %2313 = vset.pattern.permute.xlu0 0
  %2314 = vperm.xlu0 %2313, %v2251
  %v2315 = vpop.permute.xlu0 %2314
  %2316 = vset.pattern.permute.xlu0 0
  %2317 = vperm.xlu0 %2316, %v2252
  %v2318 = vpop.permute.xlu0 %2317
  %2319 = vset.pattern.permute.xlu0 0
  %2320 = vperm.xlu0 %2319, %v2253
  %v2321 = vpop.permute.xlu0 %2320
  %2322 = vset.pattern.permute.xlu0 0
  %2323 = vperm.xlu0 %2322, %v2254
  %v2324 = vpop.permute.xlu0 %2323
  %2325 = vset.pattern.permute.xlu0 0
  %2326 = vperm.xlu0 %2325, %v2255
  %v2327 = vpop.permute.xlu0 %2326
  %2328 = vset.pattern.permute.xlu0 0
  %2329 = vperm.xlu0 %2328, %v2256
  %v2330 = vpop.permute.xlu0 %2329
  %2331 = vset.pattern.permute.xlu0 0
  %2332 = vperm.xlu0 %2331, %v2257
  %v2333 = vpop.permute.xlu0 %2332
  %2334 = vset.pattern.permute.xlu0 0
  %2335 = vperm.xlu0 %2334, %v2258
  %v2336 = vpop.permute.xlu0 %2335
  %2337 = vset.pattern.permute.xlu0 0
  %2338 = vperm.xlu0 %2337, %v2259
  %v2339 = vpop.permute.xlu0 %2338
  %2340 = vset.pattern.permute.xlu0 0
  %2341 = vperm.xlu0 %2340, %v2260
  %v2342 = vpop.permute.xlu0 %2341
  %2343 = vset.pattern.permute.xlu0 0
  %2344 = vperm.xlu0 %2343, %v2261
  %v2345 = vpop.permute.xlu0 %2344
  %2346 = vset.pattern.permute.xlu0 0
  %2347 = vperm.xlu0 %2346, %v2262
  %v2348 = vpop.permute.xlu0 %2347
  %2349 = vset.pattern.permute.xlu0 0
  %2350 = vperm.xlu0 %2349, %v2263
  %v2351 = vpop.permute.xlu0 %2350
  %2352 = vset.pattern.permute.xlu0 0
  %2353 = vperm.xlu0 %2352, %v2264
  %v2354 = vpop.permute.xlu0 %2353
  %2355 = vset.pattern.permute.xlu0 0
  %2356 = vperm.xlu0 %2355, %v2265
  %v2357 = vpop.permute.xlu0 %2356
  %2358 = vset.pattern.permute.xlu0 0
  %2359 = vperm.xlu0 %2358, %v2266
  %v2360 = vpop.permute.xlu0 %2359
  %2361 = vset.pattern.permute.xlu0 0
  %2362 = vperm.xlu0 %2361, %v2267
  %v2363 = vpop.permute.xlu0 %2362
  %2364 = vset.pattern.permute.xlu0 0
  %2365 = vperm.xlu0 %2364, %v2268
  %v2366 = vpop.permute.xlu0 %2365
  %2367 = vset.pattern.permute.xlu0 0
  %2368 = vperm.xlu0 %2367, %v2269
  %v2369 = vpop.permute.xlu0 %2368
  %2370 = vset.pattern.permute.xlu0 0
  %2371 = vperm.xlu0 %2370, %v2270
  %v2372 = vpop.permute.xlu0 %2371
  %2373 = vset.pattern.permute.xlu0 0
  %2374 = vperm.xlu0 %2373, %v2271
  %v2375 = vpop.permute.xlu0 %2374
  %2376 = vset.pattern.permute.xlu0 0
  %2377 = vperm.xlu0 %2376, %v2272
  %v2378 = vpop.permute.xlu0 %2377
  %2379 = vset.pattern.permute.xlu0 0
  %2380 = vperm.xlu0 %2379, %v2273
  %v2381 = vpop.permute.xlu0 %2380
  %2382 = vset.pattern.permute.xlu0 0
  %2383 = vperm.xlu0 %2382, %v2274
  %v2384 = vpop.permute.xlu0 %2383
  %2385 = vset.pattern.permute.xlu0 0
  %2386 = vperm.xlu0 %2385, %v2275
  %v2387 = vpop.permute.xlu0 %2386
  %2388 = vset.pattern.permute.xlu0 0
  %2389 = vperm.xlu0 %2388, %v2276
  %v2390 = vpop.permute.xlu0 %2389
  %vm2391 = vcmp.eq.s32.totalorder %v2279, 1
  %vm2392 = vcmp.eq.s32.totalorder %v2282, 1
  %vm2393 = vcmp.eq.s32.totalorder %v2285, 1
  %vm2394 = vcmp.eq.s32.totalorder %v2288, 1
  %vm2395 = vcmp.eq.s32.totalorder %v2291, 1
  %vm2396 = vcmp.eq.s32.totalorder %v2294, 1
  %vm2397 = vcmp.eq.s32.totalorder %v2297, 1
  %vm2398 = vcmp.eq.s32.totalorder %v2300, 1
  %vm2399 = vcmp.eq.s32.totalorder %v2303, 1
  %vm2400 = vcmp.eq.s32.totalorder %v2306, 1
  %vm2401 = vcmp.eq.s32.totalorder %v2309, 1
  %vm2402 = vcmp.eq.s32.totalorder %v2312, 1
  %vm2403 = vcmp.eq.s32.totalorder %v2315, 1
  %vm2404 = vcmp.eq.s32.totalorder %v2318, 1
  %vm2405 = vcmp.eq.s32.totalorder %v2321, 1
  %vm2406 = vcmp.eq.s32.totalorder %v2324, 1
  %vm2407 = vcmp.eq.s32.totalorder %v2327, 1
  %vm2408 = vcmp.eq.s32.totalorder %v2330, 1
  %vm2409 = vcmp.eq.s32.totalorder %v2333, 1
  %vm2410 = vcmp.eq.s32.totalorder %v2336, 1
  %vm2411 = vcmp.eq.s32.totalorder %v2339, 1
  %vm2412 = vcmp.eq.s32.totalorder %v2342, 1
  %vm2413 = vcmp.eq.s32.totalorder %v2345, 1
  %vm2414 = vcmp.eq.s32.totalorder %v2348, 1
  %vm2415 = vcmp.eq.s32.totalorder %v2351, 1
  %vm2416 = vcmp.eq.s32.totalorder %v2354, 1
  %vm2417 = vcmp.eq.s32.totalorder %v2357, 1
  %vm2418 = vcmp.eq.s32.totalorder %v2360, 1
  %vm2419 = vcmp.eq.s32.totalorder %v2363, 1
  %vm2420 = vcmp.eq.s32.totalorder %v2366, 1
  %vm2421 = vcmp.eq.s32.totalorder %v2369, 1
  %vm2422 = vcmp.eq.s32.totalorder %v2372, 1
  %vm2423 = vcmp.eq.s32.totalorder %v2375, 1
  %vm2424 = vcmp.eq.s32.totalorder %v2378, 1
  %vm2425 = vcmp.eq.s32.totalorder %v2381, 1
  %vm2426 = vcmp.eq.s32.totalorder %v2384, 1
  %vm2427 = vcmp.eq.s32.totalorder %v2387, 1
  %vm2428 = vcmp.eq.s32.totalorder %v2390, 1
  %v2429 = vsel %vm2391, %v86, -inf
  %v2430 = vsel %vm2392, %v87, -inf
  %v2431 = vsel %vm2393, %v88, -inf
  %v2432 = vsel %vm2394, %v89, -inf
  %v2433 = vsel %vm2395, %v90, -inf
  %v2434 = vsel %vm2396, %v91, -inf
  %v2435 = vsel %vm2397, %v92, -inf
  %v2436 = vsel %vm2398, %v93, -inf
  %v2437 = vsel %vm2399, %v94, -inf
  %v2438 = vsel %vm2400, %v95, -inf
  %v2439 = vsel %vm2401, %v96, -inf
  %v2440 = vsel %vm2402, %v97, -inf
  %v2441 = vsel %vm2403, %v98, -inf
  %v2442 = vsel %vm2404, %v99, -inf
  %v2443 = vsel %vm2405, %v100, -inf
  %v2444 = vsel %vm2406, %v101, -inf
  %v2445 = vsel %vm2407, %v102, -inf
  %v2446 = vsel %vm2408, %v103, -inf
  %v2447 = vsel %vm2409, %v104, -inf
  %v2448 = vsel %vm2410, %v105, -inf
  %v2449 = vsel %vm2411, %v106, -inf
  %v2450 = vsel %vm2412, %v107, -inf
  %v2451 = vsel %vm2413, %v108, -inf
  %v2452 = vsel %vm2414, %v109, -inf
  %v2453 = vsel %vm2415, %v110, -inf
  %v2454 = vsel %vm2416, %v111, -inf
  %v2455 = vsel %vm2417, %v112, -inf
  %v2456 = vsel %vm2418, %v113, -inf
  %v2457 = vsel %vm2419, %v114, -inf
  %v2458 = vsel %vm2420, %v115, -inf
  %v2459 = vsel %vm2421, %v116, -inf
  %v2460 = vsel %vm2422, %v117, -inf
  %v2461 = vsel %vm2423, %v118, -inf
  %v2462 = vsel %vm2424, %v119, -inf
  %v2463 = vsel %vm2425, %v120, -inf
  %v2464 = vsel %vm2426, %v121, -inf
  %v2465 = vsel %vm2427, %v122, -inf
  %v2466 = vsel %vm2428, %v123, -inf
  %v2467 = vmax.f32 %v2429, %v2433
  %v2468 = vmax.f32 %v2430, %v2434
  %v2469 = vmax.f32 %v2431, %v2435
  %v2470 = vmax.f32 %v2432, %v2436
  %v2471 = vmax.f32 %v2467, %v2437
  %v2472 = vmax.f32 %v2468, %v2438
  %v2473 = vmax.f32 %v2469, %v2439
  %v2474 = vmax.f32 %v2470, %v2440
  %v2475 = vmax.f32 %v2471, %v2441
  %v2476 = vmax.f32 %v2472, %v2442
  %v2477 = vmax.f32 %v2473, %v2443
  %v2478 = vmax.f32 %v2474, %v2444
  %v2479 = vmax.f32 %v2475, %v2445
  %v2480 = vmax.f32 %v2476, %v2446
  %v2481 = vmax.f32 %v2477, %v2447
  %v2482 = vmax.f32 %v2478, %v2448
  %v2483 = vmax.f32 %v2479, %v2449
  %v2484 = vmax.f32 %v2480, %v2450
  %v2485 = vmax.f32 %v2481, %v2451
  %v2486 = vmax.f32 %v2482, %v2452
  %v2487 = vmax.f32 %v2483, %v2453
  %v2488 = vmax.f32 %v2484, %v2454
  %v2489 = vmax.f32 %v2485, %v2455
  %v2490 = vmax.f32 %v2486, %v2456
  %v2491 = vmax.f32 %v2487, %v2457
  %v2492 = vmax.f32 %v2488, %v2458
  %v2493 = vmax.f32 %v2489, %v2459
  %v2494 = vmax.f32 %v2490, %v2460
  %v2495 = vmax.f32 %v2491, %v2461
  %v2496 = vmax.f32 %v2492, %v2462
  %v2497 = vmax.f32 %v2493, %v2463
  %v2498 = vmax.f32 %v2494, %v2464
  %v2499 = vmax.f32 %v2495, %v2465
  %v2500 = vmax.f32 %v2496, %v2466
  %v2501 = vmax.f32 %v2499, %v2500
  %v2502 = vmax.f32 %v2497, %v2498
  %v2503 = vmax.f32 %v2501, %v2502
  %v2504 = vrot.slane %v2503, 4
  %v2505 = vmax.f32 %v2503, %v2504
  %v2506 = vrot.slane %v2505, 2
  %v2507 = vmax.f32 %v2505, %v2506
  %v2508 = vrot.slane %v2507, 1
  %v2509 = vmax.f32 %v2507, %v2508
  %s2510 = sadd.s32 %s85, 7
  %v2511 = vstv %s2510
  %vm2512 = vcmp.eq.s32.totalorder %v125, %v2511
  %vm2513 = vcmp.eq.s32.totalorder %v126, %v2511
  %vm2514 = vcmp.eq.s32.totalorder %v127, %v2511
  %vm2515 = vcmp.eq.s32.totalorder %v128, %v2511
  %vm2516 = vcmp.eq.s32.totalorder %v129, %v2511
  %vm2517 = vcmp.eq.s32.totalorder %v130, %v2511
  %vm2518 = vcmp.eq.s32.totalorder %v131, %v2511
  %vm2519 = vcmp.eq.s32.totalorder %v132, %v2511
  %vm2520 = vcmp.eq.s32.totalorder %v133, %v2511
  %vm2521 = vcmp.eq.s32.totalorder %v134, %v2511
  %vm2522 = vcmp.eq.s32.totalorder %v135, %v2511
  %vm2523 = vcmp.eq.s32.totalorder %v136, %v2511
  %vm2524 = vcmp.eq.s32.totalorder %v137, %v2511
  %vm2525 = vcmp.eq.s32.totalorder %v138, %v2511
  %vm2526 = vcmp.eq.s32.totalorder %v139, %v2511
  %vm2527 = vcmp.eq.s32.totalorder %v140, %v2511
  %vm2528 = vcmp.eq.s32.totalorder %v141, %v2511
  %vm2529 = vcmp.eq.s32.totalorder %v142, %v2511
  %vm2530 = vcmp.eq.s32.totalorder %v143, %v2511
  %vm2531 = vcmp.eq.s32.totalorder %v144, %v2511
  %vm2532 = vcmp.eq.s32.totalorder %v145, %v2511
  %vm2533 = vcmp.eq.s32.totalorder %v146, %v2511
  %vm2534 = vcmp.eq.s32.totalorder %v147, %v2511
  %vm2535 = vcmp.eq.s32.totalorder %v148, %v2511
  %vm2536 = vcmp.eq.s32.totalorder %v149, %v2511
  %vm2537 = vcmp.eq.s32.totalorder %v150, %v2511
  %vm2538 = vcmp.eq.s32.totalorder %v151, %v2511
  %vm2539 = vcmp.eq.s32.totalorder %v152, %v2511
  %vm2540 = vcmp.eq.s32.totalorder %v153, %v2511
  %vm2541 = vcmp.eq.s32.totalorder %v154, %v2511
  %vm2542 = vcmp.eq.s32.totalorder %v155, %v2511
  %vm2543 = vcmp.eq.s32.totalorder %v156, %v2511
  %vm2544 = vcmp.eq.s32.totalorder %v157, %v2511
  %vm2545 = vcmp.eq.s32.totalorder %v158, %v2511
  %vm2546 = vcmp.eq.s32.totalorder %v159, %v2511
  %vm2547 = vcmp.eq.s32.totalorder %v160, %v2511
  %vm2548 = vcmp.eq.s32.totalorder %v161, %v2511
  %vm2549 = vcmp.eq.s32.totalorder %v162, %v2511
  %v2550 = vsel %vm2512, 1, 0
  %v2551 = vsel %vm2513, 1, 0
  %v2552 = vsel %vm2514, 1, 0
  %v2553 = vsel %vm2515, 1, 0
  %v2554 = vsel %vm2516, 1, 0
  %v2555 = vsel %vm2517, 1, 0
  %v2556 = vsel %vm2518, 1, 0
  %v2557 = vsel %vm2519, 1, 0
  %v2558 = vsel %vm2520, 1, 0
  %v2559 = vsel %vm2521, 1, 0
  %v2560 = vsel %vm2522, 1, 0
  %v2561 = vsel %vm2523, 1, 0
  %v2562 = vsel %vm2524, 1, 0
  %v2563 = vsel %vm2525, 1, 0
  %v2564 = vsel %vm2526, 1, 0
  %v2565 = vsel %vm2527, 1, 0
  %v2566 = vsel %vm2528, 1, 0
  %v2567 = vsel %vm2529, 1, 0
  %v2568 = vsel %vm2530, 1, 0
  %v2569 = vsel %vm2531, 1, 0
  %v2570 = vsel %vm2532, 1, 0
  %v2571 = vsel %vm2533, 1, 0
  %v2572 = vsel %vm2534, 1, 0
  %v2573 = vsel %vm2535, 1, 0
  %v2574 = vsel %vm2536, 1, 0
  %v2575 = vsel %vm2537, 1, 0
  %v2576 = vsel %vm2538, 1, 0
  %v2577 = vsel %vm2539, 1, 0
  %v2578 = vsel %vm2540, 1, 0
  %v2579 = vsel %vm2541, 1, 0
  %v2580 = vsel %vm2542, 1, 0
  %v2581 = vsel %vm2543, 1, 0
  %v2582 = vsel %vm2544, 1, 0
  %v2583 = vsel %vm2545, 1, 0
  %v2584 = vsel %vm2546, 1, 0
  %v2585 = vsel %vm2547, 1, 0
  %v2586 = vsel %vm2548, 1, 0
  %v2587 = vsel %vm2549, 1, 0
  %2588 = vset.pattern.permute.xlu0 0
  %2589 = vperm.xlu0 %2588, %v2550
  %v2590 = vpop.permute.xlu0 %2589
  %2591 = vset.pattern.permute.xlu0 0
  %2592 = vperm.xlu0 %2591, %v2551
  %v2593 = vpop.permute.xlu0 %2592
  %2594 = vset.pattern.permute.xlu0 0
  %2595 = vperm.xlu0 %2594, %v2552
  %v2596 = vpop.permute.xlu0 %2595
  %2597 = vset.pattern.permute.xlu0 0
  %2598 = vperm.xlu0 %2597, %v2553
  %v2599 = vpop.permute.xlu0 %2598
  %2600 = vset.pattern.permute.xlu0 0
  %2601 = vperm.xlu0 %2600, %v2554
  %v2602 = vpop.permute.xlu0 %2601
  %2603 = vset.pattern.permute.xlu0 0
  %2604 = vperm.xlu0 %2603, %v2555
  %v2605 = vpop.permute.xlu0 %2604
  %2606 = vset.pattern.permute.xlu0 0
  %2607 = vperm.xlu0 %2606, %v2556
  %v2608 = vpop.permute.xlu0 %2607
  %2609 = vset.pattern.permute.xlu0 0
  %2610 = vperm.xlu0 %2609, %v2557
  %v2611 = vpop.permute.xlu0 %2610
  %2612 = vset.pattern.permute.xlu0 0
  %2613 = vperm.xlu0 %2612, %v2558
  %v2614 = vpop.permute.xlu0 %2613
  %2615 = vset.pattern.permute.xlu0 0
  %2616 = vperm.xlu0 %2615, %v2559
  %v2617 = vpop.permute.xlu0 %2616
  %2618 = vset.pattern.permute.xlu0 0
  %2619 = vperm.xlu0 %2618, %v2560
  %v2620 = vpop.permute.xlu0 %2619
  %2621 = vset.pattern.permute.xlu0 0
  %2622 = vperm.xlu0 %2621, %v2561
  %v2623 = vpop.permute.xlu0 %2622
  %2624 = vset.pattern.permute.xlu0 0
  %2625 = vperm.xlu0 %2624, %v2562
  %v2626 = vpop.permute.xlu0 %2625
  %2627 = vset.pattern.permute.xlu0 0
  %2628 = vperm.xlu0 %2627, %v2563
  %v2629 = vpop.permute.xlu0 %2628
  %2630 = vset.pattern.permute.xlu0 0
  %2631 = vperm.xlu0 %2630, %v2564
  %v2632 = vpop.permute.xlu0 %2631
  %2633 = vset.pattern.permute.xlu0 0
  %2634 = vperm.xlu0 %2633, %v2565
  %v2635 = vpop.permute.xlu0 %2634
  %2636 = vset.pattern.permute.xlu0 0
  %2637 = vperm.xlu0 %2636, %v2566
  %v2638 = vpop.permute.xlu0 %2637
  %2639 = vset.pattern.permute.xlu0 0
  %2640 = vperm.xlu0 %2639, %v2567
  %v2641 = vpop.permute.xlu0 %2640
  %2642 = vset.pattern.permute.xlu0 0
  %2643 = vperm.xlu0 %2642, %v2568
  %v2644 = vpop.permute.xlu0 %2643
  %2645 = vset.pattern.permute.xlu0 0
  %2646 = vperm.xlu0 %2645, %v2569
  %v2647 = vpop.permute.xlu0 %2646
  %2648 = vset.pattern.permute.xlu0 0
  %2649 = vperm.xlu0 %2648, %v2570
  %v2650 = vpop.permute.xlu0 %2649
  %2651 = vset.pattern.permute.xlu0 0
  %2652 = vperm.xlu0 %2651, %v2571
  %v2653 = vpop.permute.xlu0 %2652
  %2654 = vset.pattern.permute.xlu0 0
  %2655 = vperm.xlu0 %2654, %v2572
  %v2656 = vpop.permute.xlu0 %2655
  %2657 = vset.pattern.permute.xlu0 0
  %2658 = vperm.xlu0 %2657, %v2573
  %v2659 = vpop.permute.xlu0 %2658
  %2660 = vset.pattern.permute.xlu0 0
  %2661 = vperm.xlu0 %2660, %v2574
  %v2662 = vpop.permute.xlu0 %2661
  %2663 = vset.pattern.permute.xlu0 0
  %2664 = vperm.xlu0 %2663, %v2575
  %v2665 = vpop.permute.xlu0 %2664
  %2666 = vset.pattern.permute.xlu0 0
  %2667 = vperm.xlu0 %2666, %v2576
  %v2668 = vpop.permute.xlu0 %2667
  %2669 = vset.pattern.permute.xlu0 0
  %2670 = vperm.xlu0 %2669, %v2577
  %v2671 = vpop.permute.xlu0 %2670
  %2672 = vset.pattern.permute.xlu0 0
  %2673 = vperm.xlu0 %2672, %v2578
  %v2674 = vpop.permute.xlu0 %2673
  %2675 = vset.pattern.permute.xlu0 0
  %2676 = vperm.xlu0 %2675, %v2579
  %v2677 = vpop.permute.xlu0 %2676
  %2678 = vset.pattern.permute.xlu0 0
  %2679 = vperm.xlu0 %2678, %v2580
  %v2680 = vpop.permute.xlu0 %2679
  %2681 = vset.pattern.permute.xlu0 0
  %2682 = vperm.xlu0 %2681, %v2581
  %v2683 = vpop.permute.xlu0 %2682
  %2684 = vset.pattern.permute.xlu0 0
  %2685 = vperm.xlu0 %2684, %v2582
  %v2686 = vpop.permute.xlu0 %2685
  %2687 = vset.pattern.permute.xlu0 0
  %2688 = vperm.xlu0 %2687, %v2583
  %v2689 = vpop.permute.xlu0 %2688
  %2690 = vset.pattern.permute.xlu0 0
  %2691 = vperm.xlu0 %2690, %v2584
  %v2692 = vpop.permute.xlu0 %2691
  %2693 = vset.pattern.permute.xlu0 0
  %2694 = vperm.xlu0 %2693, %v2585
  %v2695 = vpop.permute.xlu0 %2694
  %2696 = vset.pattern.permute.xlu0 0
  %2697 = vperm.xlu0 %2696, %v2586
  %v2698 = vpop.permute.xlu0 %2697
  %2699 = vset.pattern.permute.xlu0 0
  %2700 = vperm.xlu0 %2699, %v2587
  %v2701 = vpop.permute.xlu0 %2700
  %vm2702 = vcmp.eq.s32.totalorder %v2590, 1
  %vm2703 = vcmp.eq.s32.totalorder %v2593, 1
  %vm2704 = vcmp.eq.s32.totalorder %v2596, 1
  %vm2705 = vcmp.eq.s32.totalorder %v2599, 1
  %vm2706 = vcmp.eq.s32.totalorder %v2602, 1
  %vm2707 = vcmp.eq.s32.totalorder %v2605, 1
  %vm2708 = vcmp.eq.s32.totalorder %v2608, 1
  %vm2709 = vcmp.eq.s32.totalorder %v2611, 1
  %vm2710 = vcmp.eq.s32.totalorder %v2614, 1
  %vm2711 = vcmp.eq.s32.totalorder %v2617, 1
  %vm2712 = vcmp.eq.s32.totalorder %v2620, 1
  %vm2713 = vcmp.eq.s32.totalorder %v2623, 1
  %vm2714 = vcmp.eq.s32.totalorder %v2626, 1
  %vm2715 = vcmp.eq.s32.totalorder %v2629, 1
  %vm2716 = vcmp.eq.s32.totalorder %v2632, 1
  %vm2717 = vcmp.eq.s32.totalorder %v2635, 1
  %vm2718 = vcmp.eq.s32.totalorder %v2638, 1
  %vm2719 = vcmp.eq.s32.totalorder %v2641, 1
  %vm2720 = vcmp.eq.s32.totalorder %v2644, 1
  %vm2721 = vcmp.eq.s32.totalorder %v2647, 1
  %vm2722 = vcmp.eq.s32.totalorder %v2650, 1
  %vm2723 = vcmp.eq.s32.totalorder %v2653, 1
  %vm2724 = vcmp.eq.s32.totalorder %v2656, 1
  %vm2725 = vcmp.eq.s32.totalorder %v2659, 1
  %vm2726 = vcmp.eq.s32.totalorder %v2662, 1
  %vm2727 = vcmp.eq.s32.totalorder %v2665, 1
  %vm2728 = vcmp.eq.s32.totalorder %v2668, 1
  %vm2729 = vcmp.eq.s32.totalorder %v2671, 1
  %vm2730 = vcmp.eq.s32.totalorder %v2674, 1
  %vm2731 = vcmp.eq.s32.totalorder %v2677, 1
  %vm2732 = vcmp.eq.s32.totalorder %v2680, 1
  %vm2733 = vcmp.eq.s32.totalorder %v2683, 1
  %vm2734 = vcmp.eq.s32.totalorder %v2686, 1
  %vm2735 = vcmp.eq.s32.totalorder %v2689, 1
  %vm2736 = vcmp.eq.s32.totalorder %v2692, 1
  %vm2737 = vcmp.eq.s32.totalorder %v2695, 1
  %vm2738 = vcmp.eq.s32.totalorder %v2698, 1
  %vm2739 = vcmp.eq.s32.totalorder %v2701, 1
  %v2740 = vsel %vm2702, %v86, -inf
  %v2741 = vsel %vm2703, %v87, -inf
  %v2742 = vsel %vm2704, %v88, -inf
  %v2743 = vsel %vm2705, %v89, -inf
  %v2744 = vsel %vm2706, %v90, -inf
  %v2745 = vsel %vm2707, %v91, -inf
  %v2746 = vsel %vm2708, %v92, -inf
  %v2747 = vsel %vm2709, %v93, -inf
  %v2748 = vsel %vm2710, %v94, -inf
  %v2749 = vsel %vm2711, %v95, -inf
  %v2750 = vsel %vm2712, %v96, -inf
  %v2751 = vsel %vm2713, %v97, -inf
  %v2752 = vsel %vm2714, %v98, -inf
  %v2753 = vsel %vm2715, %v99, -inf
  %v2754 = vsel %vm2716, %v100, -inf
  %v2755 = vsel %vm2717, %v101, -inf
  %v2756 = vsel %vm2718, %v102, -inf
  %v2757 = vsel %vm2719, %v103, -inf
  %v2758 = vsel %vm2720, %v104, -inf
  %v2759 = vsel %vm2721, %v105, -inf
  %v2760 = vsel %vm2722, %v106, -inf
  %v2761 = vsel %vm2723, %v107, -inf
  %v2762 = vsel %vm2724, %v108, -inf
  %v2763 = vsel %vm2725, %v109, -inf
  %v2764 = vsel %vm2726, %v110, -inf
  %v2765 = vsel %vm2727, %v111, -inf
  %v2766 = vsel %vm2728, %v112, -inf
  %v2767 = vsel %vm2729, %v113, -inf
  %v2768 = vsel %vm2730, %v114, -inf
  %v2769 = vsel %vm2731, %v115, -inf
  %v2770 = vsel %vm2732, %v116, -inf
  %v2771 = vsel %vm2733, %v117, -inf
  %v2772 = vsel %vm2734, %v118, -inf
  %v2773 = vsel %vm2735, %v119, -inf
  %v2774 = vsel %vm2736, %v120, -inf
  %v2775 = vsel %vm2737, %v121, -inf
  %v2776 = vsel %vm2738, %v122, -inf
  %v2777 = vsel %vm2739, %v123, -inf
  %v2778 = vmax.f32 %v2740, %v2744
  %v2779 = vmax.f32 %v2741, %v2745
  %v2780 = vmax.f32 %v2742, %v2746
  %v2781 = vmax.f32 %v2743, %v2747
  %v2782 = vmax.f32 %v2778, %v2748
  %v2783 = vmax.f32 %v2779, %v2749
  %v2784 = vmax.f32 %v2780, %v2750
  %v2785 = vmax.f32 %v2781, %v2751
  %v2786 = vmax.f32 %v2782, %v2752
  %v2787 = vmax.f32 %v2783, %v2753
  %v2788 = vmax.f32 %v2784, %v2754
  %v2789 = vmax.f32 %v2785, %v2755
  %v2790 = vmax.f32 %v2786, %v2756
  %v2791 = vmax.f32 %v2787, %v2757
  %v2792 = vmax.f32 %v2788, %v2758
  %v2793 = vmax.f32 %v2789, %v2759
  %v2794 = vmax.f32 %v2790, %v2760
  %v2795 = vmax.f32 %v2791, %v2761
  %v2796 = vmax.f32 %v2792, %v2762
  %v2797 = vmax.f32 %v2793, %v2763
  %v2798 = vmax.f32 %v2794, %v2764
  %v2799 = vmax.f32 %v2795, %v2765
  %v2800 = vmax.f32 %v2796, %v2766
  %v2801 = vmax.f32 %v2797, %v2767
  %v2802 = vmax.f32 %v2798, %v2768
  %v2803 = vmax.f32 %v2799, %v2769
  %v2804 = vmax.f32 %v2800, %v2770
  %v2805 = vmax.f32 %v2801, %v2771
  %v2806 = vmax.f32 %v2802, %v2772
  %v2807 = vmax.f32 %v2803, %v2773
  %v2808 = vmax.f32 %v2804, %v2774
  %v2809 = vmax.f32 %v2805, %v2775
  %v2810 = vmax.f32 %v2806, %v2776
  %v2811 = vmax.f32 %v2807, %v2777
  %v2812 = vmax.f32 %v2810, %v2811
  %v2813 = vmax.f32 %v2808, %v2809
  %v2814 = vmax.f32 %v2812, %v2813
  %v2815 = vrot.slane %v2814, 4
  %v2816 = vmax.f32 %v2814, %v2815
  %v2817 = vrot.slane %v2816, 2
  %v2818 = vmax.f32 %v2816, %v2817
  %v2819 = vrot.slane %v2818, 1
  %v2820 = vmax.f32 %v2818, %v2819
  %v2821 = vld [vmem:[#allocation2] sm:$0xff]
  %vm2822 = vcmask 1040384
  %v2823 = vsel %vm2822, %v643, %v954
  %vm2824 = vcmask 1041408
  %v2825 = vsel %vm2824, %v2823, %v1265
  %vm2826 = vcmask 1042432
  %v2827 = vsel %vm2826, %v2825, %v1576
  %vm2828 = vcmask 1043456
  %v2829 = vsel %vm2828, %v2827, %v1887
  %vm2830 = vcmask 1044480
  %v2831 = vsel %vm2830, %v2829, %v2198
  %vm2832 = vcmask 1045504
  %v2833 = vsel %vm2832, %v2831, %v2509
  %vm2834 = vcmask 1046528
  %v2835 = vsel %vm2834, %v2833, %v2820
  %v2836 = vmax.f32 %v2821, %v2835
  %2837 = vst [vmem:[#allocation2] sm:$0xff] %v2836
  // Predicated region
  $region18: #{permut_inv_gp.1} parent=0 // pred_check
    %p2838 = pneg %p79
  $region19: #{permut_inv_gp.1} parent=0 // pred_check_branch
    %2840 = sbr.rel (%p2838) target = $region21
  $region20: #{permut_inv_gp.1} parent=0 // pred_region
    %v2841 = vld [vmem:[#allocation2] sm:$0xff]
    %2842 = vst [vmem:[%s3] sm:$0xff] %v2841
    %v2843 = vld [vmem:[#allocation3] sm:$0xff]
    %2844 = vst [vmem:[%s4] sm:$0xff] %v2843
  $region21: #{permut_inv_gp.1} parent=0 // pred_fallthru
    _
  // Predicated region
  $region22: #{permut_inv_gp.1} parent=0 // pred_check
    _
  $region23: #{permut_inv_gp.1} parent=0 // pred_check_branch
    %2846 = sbr.rel (0) target = $region25
  $region24: #{permut_inv_gp.1} parent=0 // pred_region
    _
  $region25: #{permut_inv_gp.1} parent=0 // pred_fallthru
    _
  // Predicated region
  $region26: #{permut_inv_gp.1} parent=0 // pred_check
    _
  $region27: #{permut_inv_gp.1} parent=0 // pred_check_branch
    %2848 = sbr.rel (0) target = $region29
  $region28: #{permut_inv_gp.1} parent=0 // pred_region
    _
  $region29: #{permut_inv_gp.1} parent=0 // pred_fallthru
    _
  // Predicated region
  $region30: #{permut_inv_gp.1} parent=0 // pred_check
    _
  $region31: #{permut_inv_gp.1} parent=0 // pred_check_branch
    %2850 = sbr.rel (0) target = $region33
  $region32: #{permut_inv_gp.1} parent=0 // pred_region
    _
  $region33: #{permut_inv_gp.1} parent=0 // pred_fallthru
    _
  // Predicated region
  $region34: #{permut_inv_gp.1} parent=0 // pred_check
    _
  $region35: #{permut_inv_gp.1} parent=0 // pred_check_branch
    %2852 = sbr.rel (0) target = $region37
  $region36: #{permut_inv_gp.1} parent=0 // pred_region
    _
  $region37: #{permut_inv_gp.1} parent=0 // pred_fallthru
    _

</llo_original>
